<compile_context>
chip_gen: v6e
topology: v6e:2x2x1
jax: 0.10.0
libtpu: 0.0.40
codegen_flags: <defaults>
</compile_context>

<pallas_src>
import jax
import jax.numpy as jnp
from jax.experimental import pallas as pl
from jax.experimental.pallas import tpu as pltpu

BN_EPS = 1e-5


def _basic_block_kernel(x_ref, w1_ref, g1_ref, b1_ref, w2_ref, g2_ref, b2_ref,
                        out_ref, pad_ref):
    """Fused conv1+bn1+relu -> conv2+bn2+residual+relu, all lane-dense.

    x_ref   : (B*H, W*C)     f32  lane-dense input (reshape of NHWC)
    w*_ref  : (3, W*C, W*C)  bf16 banded conv weights, one matrix per dy
    g*_ref  : (1, C)         f32  BN gamma
    b*_ref  : (1, C)         f32  BN beta
    out_ref : (B*H, W*C)     f32  lane-dense output
    pad_ref : (B, H+2, W*C)  bf16 H-halo scratch (reused by both stages)
    """
    B, Hp2, WC = pad_ref.shape
    H = Hp2 - 2
    C = g1_ref.shape[-1]
    W = WC // C
    inv_n = 1.0 / float(B * H * W)

    def conv3x3(w_ref):
        # 3 dense bf16 MXU matmuls (one per dy); the dx taps and W-direction
        # shift/zero-pad are pre-folded into the banded weights.  f32 accum.
        acc = None
        for dy in range(3):
            slab = pad_ref[:, pl.ds(dy, H), :].reshape(B * H, WC)
            part = jnp.dot(slab, w_ref[dy], preferred_element_type=jnp.float32)
            acc = part if acc is None else acc + part
        return acc                                        # (B*H, W*C) f32

    def ch_fold(row):                                     # (1, W*C) -> (1, C)
        tot = row[:, 0:C]
        for w in range(1, W):
            tot = tot + row[:, w * C:(w + 1) * C]
        return tot

    def ch_spread(vec):                                   # (1, C) -> (1, W*C)
        return jnp.concatenate([vec] * W, axis=1)

    def bn_relu(acc, g_ref, b_ref, residual=None):
        # Training-mode BatchNorm2d: biased batch stats over (N, H, W).
        mean_c = ch_fold(jnp.sum(acc, axis=0, keepdims=True)) * inv_n
        diff = acc - ch_spread(mean_c)
        var_c = ch_fold(jnp.sum(diff * diff, axis=0, keepdims=True)) * inv_n
        scale_c = g_ref[...] * jax.lax.rsqrt(var_c + BN_EPS)
        y = diff * ch_spread(scale_c) + ch_spread(b_ref[...])
        if residual is not None:
            y = y + residual
        return jnp.maximum(y, 0.0)

    # Zero only the two H-halo border rows (once; both stages reuse them).
    zrow = jnp.zeros((B, 1, WC), jnp.bfloat16)
    pad_ref[:, pl.ds(0, 1), :] = zrow
    pad_ref[:, pl.ds(H + 1, 1), :] = zrow

    # ---- stage 1: conv1 -> bn1 -> relu (activation stays in VMEM) --------
    x = x_ref[...]                                        # (B*H, W*C) f32
    pad_ref[:, pl.ds(1, H), :] = x.astype(jnp.bfloat16).reshape(B, H, WC)
    y1 = bn_relu(conv3x3(w1_ref), g1_ref, b1_ref)
    # Single dense bf16 writeback of the stage-1 activation into the halo buf.
    pad_ref[:, pl.ds(1, H), :] = y1.astype(jnp.bfloat16).reshape(B, H, WC)

    # ---- stage 2: conv2 -> bn2 -> +residual -> relu -----------------------
    out_ref[...] = bn_relu(conv3x3(w2_ref), g2_ref, b2_ref,
                           residual=x).astype(out_ref.dtype)


def _banded_conv_weights(w_hwio, width):
    """(3, 3, Cin, Cout) -> (3, width*Cin, width*Cout) bf16.

    For each dy, fold the three dx taps and the W-direction shift (with its
    zero boundary) into one banded block matrix:
        sum_dx kron(eye(width, k=1-dx), w[dy, dx])
    so each 3x3 conv becomes three dense, lane-aligned MXU matmuls.
    """
    rows = []
    for dy in range(3):
        m = sum(jnp.kron(jnp.eye(width, k=1 - dx, dtype=w_hwio.dtype),
                         w_hwio[dy, dx]) for dx in range(3))
        rows.append(m)
    return jnp.stack(rows).astype(jnp.bfloat16)


@jax.jit
def basic_block_forward(x_nchw, params):
    """BasicBlock(inplanes=planes, planes, stride=1, downsample=None).forward."""
    x = jnp.transpose(x_nchw, (0, 2, 3, 1))               # NCHW -> NHWC
    B, H, W, C = x.shape
    WC = W * C
    assert WC % 128 == 0, "lane-dense layout needs W*C to be a multiple of 128"

    x_dense = x.reshape(B * H, WC)                         # same memory order (free)

    w1 = _banded_conv_weights(params["w1"], W)
    w2 = _banded_conv_weights(params["w2"], W)
    g1 = params["g1"].reshape(1, C).astype(jnp.float32)
    b1 = params["b1"].reshape(1, C).astype(jnp.float32)
    g2 = params["g2"].reshape(1, C).astype(jnp.float32)
    b2 = params["b2"].reshape(1, C).astype(jnp.float32)

    vmem = pl.BlockSpec(memory_space=pltpu.MemorySpace.VMEM)
    out2d = pl.pallas_call(
        _basic_block_kernel,
        out_shape=jax.ShapeDtypeStruct((B * H, WC), x.dtype),
        in_specs=[vmem] * 7,
        out_specs=vmem,
        scratch_shapes=[pltpu.VMEM((B, H + 2, WC), jnp.bfloat16)],  # bf16 H-halo
    )(x_dense, w1, g1, b1, w2, g2, b2)

    out = out2d.reshape(B, H, W, C)
    return jnp.transpose(out, (0, 3, 1, 2))                # NHWC -> NCHW


def _reference_forward(x_nchw, params):
    """Pure-JAX reference with matched precision: bf16 conv inputs/weights,
    f32 accumulation, f32 BN/residual math (training-mode BatchNorm)."""
    def conv(x, w):
        return jax.lax.conv_general_dilated(
            x.astype(jnp.bfloat16), w.astype(jnp.bfloat16),
            window_strides=(1, 1), padding="SAME",
            dimension_numbers=("NCHW", "HWIO", "NCHW"),
            preferred_element_type=jnp.float32)

    def bn(y, g, b):
        mean = jnp.mean(y, axis=(0, 2, 3), keepdims=True)
        var = jnp.mean((y - mean) ** 2, axis=(0, 2, 3), keepdims=True)
        return ((y - mean) * jax.lax.rsqrt(var + BN_EPS)
                * g.reshape(1, -1, 1, 1) + b.reshape(1, -1, 1, 1))

    out = jax.nn.relu(bn(conv(x_nchw, params["w1"]), params["g1"], params["b1"]))
    out = bn(conv(out, params["w2"]), params["g2"], params["b2"])
    return jax.nn.relu(out + x_nchw)


if __name__ == "__main__":
    key = jax.random.PRNGKey(0)
    kx, k1, k2, kg1, kb1, kg2, kb2 = jax.random.split(key, 7)

    B, planes, H, W = 2, 8, 16, 16           # inplanes == planes, stride == 1

    x = jax.random.normal(kx, (B, planes, H, W), jnp.float32)  # NCHW like PyTorch

    params = {
        "w1": 0.1 * jax.random.normal(k1, (3, 3, planes, planes), jnp.float32),
        "g1": 1.0 + 0.1 * jax.random.normal(kg1, (planes,), jnp.float32),
        "b1": 0.1 * jax.random.normal(kb1, (planes,), jnp.float32),
        "w2": 0.1 * jax.random.normal(k2, (3, 3, planes, planes), jnp.float32),
        "g2": 1.0 + 0.1 * jax.random.normal(kg2, (planes,), jnp.float32),
        "b2": 0.1 * jax.random.normal(kb2, (planes,), jnp.float32),
    }

    out = jax.block_until_ready(basic_block_forward(x, params))
    ref = jax.block_until_ready(_reference_forward(x, params))

    assert out.shape == (B, planes, H, W), out.shape
    # Kernel and reference both use bf16 matmul inputs with f32 accumulation;
    # remaining differences are summation-order level. A wrong kernel gives
    # O(1) errors, so this tolerance still validates correctness.
    assert jnp.allclose(out, ref, rtol=1e-2, atol=1e-2), float(
        jnp.max(jnp.abs(out - ref)))

    print("KERNEL_OK")
</pallas_src>

<mosaic_0001>
module attributes {stable_mosaic.version = 11 : i64} {
  func.func @_basic_block_kernel(%arg0: memref<32x128xf32, #tpu.memory_space<vmem>>, %arg1: memref<3x128x128xbf16, #tpu.memory_space<vmem>>, %arg2: memref<1x8xf32, #tpu.memory_space<vmem>>, %arg3: memref<1x8xf32, #tpu.memory_space<vmem>>, %arg4: memref<3x128x128xbf16, #tpu.memory_space<vmem>>, %arg5: memref<1x8xf32, #tpu.memory_space<vmem>>, %arg6: memref<1x8xf32, #tpu.memory_space<vmem>>, %arg7: memref<32x128xf32, #tpu.memory_space<vmem>>, %arg8: memref<2x18x128xbf16, #tpu.memory_space<vmem>>) attributes {dimension_semantics = [], scalar_prefetch = 0 : i64, scratch_operands = 1 : i64, tpu.core_type = #tpu.core_type<tc>} {
    %cst = arith.constant 0.000000e+00 : bf16
    %0 = vector.broadcast %cst : bf16 to vector<2x1x128xbf16>
    %c0 = arith.constant 0 : index
    %c0_0 = arith.constant 0 : index
    %c0_1 = arith.constant 0 : index
    %1 = vector.load %arg8[%c0, %c0_0, %c0_1] : memref<2x18x128xbf16, #tpu.memory_space<vmem>>, vector<2x1x128xbf16>
    tpu.vector_store %arg8[%c0, %c0_0, %c0_1], %0 {strides = array<i32>} : memref<2x18x128xbf16, #tpu.memory_space<vmem>>, vector<2x1x128xbf16>,
    %c0_2 = arith.constant 0 : index
    %c17 = arith.constant 17 : index
    %c0_3 = arith.constant 0 : index
    %2 = vector.load %arg8[%c0_2, %c17, %c0_3] : memref<2x18x128xbf16, #tpu.memory_space<vmem>>, vector<2x1x128xbf16>
    tpu.vector_store %arg8[%c0_2, %c17, %c0_3], %0 {strides = array<i32>} : memref<2x18x128xbf16, #tpu.memory_space<vmem>>, vector<2x1x128xbf16>,
    %c0_4 = arith.constant 0 : index
    %c0_5 = arith.constant 0 : index
    %3 = vector.load %arg0[%c0_4, %c0_5] : memref<32x128xf32, #tpu.memory_space<vmem>>, vector<32x128xf32>
    %4 = arith.truncf %3 : vector<32x128xf32> to vector<32x128xbf16>
    %5 = vector.shape_cast %4 : vector<32x128xbf16> to vector<2x16x128xbf16>
    %c0_6 = arith.constant 0 : index
    %c1 = arith.constant 1 : index
    %c0_7 = arith.constant 0 : index
    %6 = vector.load %arg8[%c0_6, %c1, %c0_7] : memref<2x18x128xbf16, #tpu.memory_space<vmem>>, vector<2x16x128xbf16>
    tpu.vector_store %arg8[%c0_6, %c1, %c0_7], %5 {strides = array<i32>} : memref<2x18x128xbf16, #tpu.memory_space<vmem>>, vector<2x16x128xbf16>,
    %c0_8 = arith.constant 0 : index
    %c0_9 = arith.constant 0 : index
    %c0_10 = arith.constant 0 : index
    %7 = vector.load %arg8[%c0_8, %c0_9, %c0_10] : memref<2x18x128xbf16, #tpu.memory_space<vmem>>, vector<2x16x128xbf16>
    %8 = vector.shape_cast %7 : vector<2x16x128xbf16> to vector<32x128xbf16>
    %c0_11 = arith.constant 0 : index
    %c0_12 = arith.constant 0 : index
    %c0_13 = arith.constant 0 : index
    %9 = vector.load %arg1[%c0_11, %c0_12, %c0_13] : memref<3x128x128xbf16, #tpu.memory_space<vmem>>, vector<1x128x128xbf16>
    %10 = vector.shape_cast %9 : vector<1x128x128xbf16> to vector<128x128xbf16>
    %cst_14 = arith.constant dense<0.000000e+00> : vector<32x128xf32>
    %11 = tpu.matmul %8, %10, %cst_14 {dimension_numbers = #tpu.dot_dimension_numbers<[1], [0], [0], [1], [0, 0, 1, 1], [], []>} : vector<32x128xbf16>, vector<128x128xbf16>, vector<32x128xf32> -> vector<32x128xf32>
    %c0_15 = arith.constant 0 : index
    %c1_16 = arith.constant 1 : index
    %c0_17 = arith.constant 0 : index
    %12 = vector.load %arg8[%c0_15, %c1_16, %c0_17] : memref<2x18x128xbf16, #tpu.memory_space<vmem>>, vector<2x16x128xbf16>
    %13 = vector.shape_cast %12 : vector<2x16x128xbf16> to vector<32x128xbf16>
    %c1_18 = arith.constant 1 : index
    %c0_19 = arith.constant 0 : index
    %c0_20 = arith.constant 0 : index
    %14 = vector.load %arg1[%c1_18, %c0_19, %c0_20] : memref<3x128x128xbf16, #tpu.memory_space<vmem>>, vector<1x128x128xbf16>
    %15 = vector.shape_cast %14 : vector<1x128x128xbf16> to vector<128x128xbf16>
    %cst_21 = arith.constant dense<0.000000e+00> : vector<32x128xf32>
    %16 = tpu.matmul %13, %15, %cst_21 {dimension_numbers = #tpu.dot_dimension_numbers<[1], [0], [0], [1], [0, 0, 1, 1], [], []>} : vector<32x128xbf16>, vector<128x128xbf16>, vector<32x128xf32> -> vector<32x128xf32>
    %17 = arith.addf %11, %16 : vector<32x128xf32>
    %c0_22 = arith.constant 0 : index
    %c2 = arith.constant 2 : index
    %c0_23 = arith.constant 0 : index
    %18 = vector.load %arg8[%c0_22, %c2, %c0_23] : memref<2x18x128xbf16, #tpu.memory_space<vmem>>, vector<2x16x128xbf16>
    %19 = vector.shape_cast %18 : vector<2x16x128xbf16> to vector<32x128xbf16>
    %c2_24 = arith.constant 2 : index
    %c0_25 = arith.constant 0 : index
    %c0_26 = arith.constant 0 : index
    %20 = vector.load %arg1[%c2_24, %c0_25, %c0_26] : memref<3x128x128xbf16, #tpu.memory_space<vmem>>, vector<1x128x128xbf16>
    %21 = vector.shape_cast %20 : vector<1x128x128xbf16> to vector<128x128xbf16>
    %cst_27 = arith.constant dense<0.000000e+00> : vector<32x128xf32>
    %22 = tpu.matmul %19, %21, %cst_27 {dimension_numbers = #tpu.dot_dimension_numbers<[1], [0], [0], [1], [0, 0, 1, 1], [], []>} : vector<32x128xbf16>, vector<128x128xbf16>, vector<32x128xf32> -> vector<32x128xf32>
    %23 = arith.addf %17, %22 : vector<32x128xf32>
    %cst_28 = arith.constant dense<0.000000e+00> : vector<128xf32>
    %24 = vector.multi_reduction <add>, %23, %cst_28 [0] : vector<32x128xf32> to vector<128xf32>
    %25 = vector.shape_cast %24 : vector<128xf32> to vector<1x128xf32>
    %26 = vector.extract_strided_slice %25 {offsets = [0, 0], sizes = [1, 8], strides = [1, 1]} : vector<1x128xf32> to vector<1x8xf32>
    %27 = vector.extract_strided_slice %25 {offsets = [0, 8], sizes = [1, 8], strides = [1, 1]} : vector<1x128xf32> to vector<1x8xf32>
    %28 = arith.addf %26, %27 : vector<1x8xf32>
    %29 = vector.extract_strided_slice %25 {offsets = [0, 16], sizes = [1, 8], strides = [1, 1]} : vector<1x128xf32> to vector<1x8xf32>
    %30 = arith.addf %28, %29 : vector<1x8xf32>
    %31 = vector.extract_strided_slice %25 {offsets = [0, 24], sizes = [1, 8], strides = [1, 1]} : vector<1x128xf32> to vector<1x8xf32>
    %32 = arith.addf %30, %31 : vector<1x8xf32>
    %33 = vector.extract_strided_slice %25 {offsets = [0, 32], sizes = [1, 8], strides = [1, 1]} : vector<1x128xf32> to vector<1x8xf32>
    %34 = arith.addf %32, %33 : vector<1x8xf32>
    %35 = vector.extract_strided_slice %25 {offsets = [0, 40], sizes = [1, 8], strides = [1, 1]} : vector<1x128xf32> to vector<1x8xf32>
    %36 = arith.addf %34, %35 : vector<1x8xf32>
    %37 = vector.extract_strided_slice %25 {offsets = [0, 48], sizes = [1, 8], strides = [1, 1]} : vector<1x128xf32> to vector<1x8xf32>
    %38 = arith.addf %36, %37 : vector<1x8xf32>
    %39 = vector.extract_strided_slice %25 {offsets = [0, 56], sizes = [1, 8], strides = [1, 1]} : vector<1x128xf32> to vector<1x8xf32>
    %40 = arith.addf %38, %39 : vector<1x8xf32>
    %41 = vector.extract_strided_slice %25 {offsets = [0, 64], sizes = [1, 8], strides = [1, 1]} : vector<1x128xf32> to vector<1x8xf32>
    %42 = arith.addf %40, %41 : vector<1x8xf32>
    %43 = vector.extract_strided_slice %25 {offsets = [0, 72], sizes = [1, 8], strides = [1, 1]} : vector<1x128xf32> to vector<1x8xf32>
    %44 = arith.addf %42, %43 : vector<1x8xf32>
    %45 = vector.extract_strided_slice %25 {offsets = [0, 80], sizes = [1, 8], strides = [1, 1]} : vector<1x128xf32> to vector<1x8xf32>
    %46 = arith.addf %44, %45 : vector<1x8xf32>
    %47 = vector.extract_strided_slice %25 {offsets = [0, 88], sizes = [1, 8], strides = [1, 1]} : vector<1x128xf32> to vector<1x8xf32>
    %48 = arith.addf %46, %47 : vector<1x8xf32>
    %49 = vector.extract_strided_slice %25 {offsets = [0, 96], sizes = [1, 8], strides = [1, 1]} : vector<1x128xf32> to vector<1x8xf32>
    %50 = arith.addf %48, %49 : vector<1x8xf32>
    %51 = vector.extract_strided_slice %25 {offsets = [0, 104], sizes = [1, 8], strides = [1, 1]} : vector<1x128xf32> to vector<1x8xf32>
    %52 = arith.addf %50, %51 : vector<1x8xf32>
    %53 = vector.extract_strided_slice %25 {offsets = [0, 112], sizes = [1, 8], strides = [1, 1]} : vector<1x128xf32> to vector<1x8xf32>
    %54 = arith.addf %52, %53 : vector<1x8xf32>
    %55 = vector.extract_strided_slice %25 {offsets = [0, 120], sizes = [1, 8], strides = [1, 1]} : vector<1x128xf32> to vector<1x8xf32>
    %56 = arith.addf %54, %55 : vector<1x8xf32>
    %cst_29 = arith.constant 0.001953125 : f32
    %57 = vector.broadcast %cst_29 : f32 to vector<1x8xf32>
    %58 = arith.mulf %56, %57 : vector<1x8xf32>
    %59 = tpu.concatenate %58, %58, %58, %58, %58, %58, %58, %58, %58, %58, %58, %58, %58, %58, %58, %58 in 1 : vector<1x8xf32>, vector<1x8xf32>, vector<1x8xf32>, vector<1x8xf32>, vector<1x8xf32>, vector<1x8xf32>, vector<1x8xf32>, vector<1x8xf32>, vector<1x8xf32>, vector<1x8xf32>, vector<1x8xf32>, vector<1x8xf32>, vector<1x8xf32>, vector<1x8xf32>, vector<1x8xf32>, vector<1x8xf32> -> vector<1x128xf32>
    %60 = vector.broadcast %59 : vector<1x128xf32> to vector<32x128xf32>
    %61 = arith.subf %23, %60 : vector<32x128xf32>
    %62 = arith.mulf %61, %61 : vector<32x128xf32>
    %cst_30 = arith.constant dense<0.000000e+00> : vector<128xf32>
    %63 = vector.multi_reduction <add>, %62, %cst_30 [0] : vector<32x128xf32> to vector<128xf32>
    %64 = vector.shape_cast %63 : vector<128xf32> to vector<1x128xf32>
    %65 = vector.extract_strided_slice %64 {offsets = [0, 0], sizes = [1, 8], strides = [1, 1]} : vector<1x128xf32> to vector<1x8xf32>
    %66 = vector.extract_strided_slice %64 {offsets = [0, 8], sizes = [1, 8], strides = [1, 1]} : vector<1x128xf32> to vector<1x8xf32>
    %67 = arith.addf %65, %66 : vector<1x8xf32>
    %68 = vector.extract_strided_slice %64 {offsets = [0, 16], sizes = [1, 8], strides = [1, 1]} : vector<1x128xf32> to vector<1x8xf32>
    %69 = arith.addf %67, %68 : vector<1x8xf32>
    %70 = vector.extract_strided_slice %64 {offsets = [0, 24], sizes = [1, 8], strides = [1, 1]} : vector<1x128xf32> to vector<1x8xf32>
    %71 = arith.addf %69, %70 : vector<1x8xf32>
    %72 = vector.extract_strided_slice %64 {offsets = [0, 32], sizes = [1, 8], strides = [1, 1]} : vector<1x128xf32> to vector<1x8xf32>
    %73 = arith.addf %71, %72 : vector<1x8xf32>
    %74 = vector.extract_strided_slice %64 {offsets = [0, 40], sizes = [1, 8], strides = [1, 1]} : vector<1x128xf32> to vector<1x8xf32>
    %75 = arith.addf %73, %74 : vector<1x8xf32>
    %76 = vector.extract_strided_slice %64 {offsets = [0, 48], sizes = [1, 8], strides = [1, 1]} : vector<1x128xf32> to vector<1x8xf32>
    %77 = arith.addf %75, %76 : vector<1x8xf32>
    %78 = vector.extract_strided_slice %64 {offsets = [0, 56], sizes = [1, 8], strides = [1, 1]} : vector<1x128xf32> to vector<1x8xf32>
    %79 = arith.addf %77, %78 : vector<1x8xf32>
    %80 = vector.extract_strided_slice %64 {offsets = [0, 64], sizes = [1, 8], strides = [1, 1]} : vector<1x128xf32> to vector<1x8xf32>
    %81 = arith.addf %79, %80 : vector<1x8xf32>
    %82 = vector.extract_strided_slice %64 {offsets = [0, 72], sizes = [1, 8], strides = [1, 1]} : vector<1x128xf32> to vector<1x8xf32>
    %83 = arith.addf %81, %82 : vector<1x8xf32>
    %84 = vector.extract_strided_slice %64 {offsets = [0, 80], sizes = [1, 8], strides = [1, 1]} : vector<1x128xf32> to vector<1x8xf32>
    %85 = arith.addf %83, %84 : vector<1x8xf32>
    %86 = vector.extract_strided_slice %64 {offsets = [0, 88], sizes = [1, 8], strides = [1, 1]} : vector<1x128xf32> to vector<1x8xf32>
    %87 = arith.addf %85, %86 : vector<1x8xf32>
    %88 = vector.extract_strided_slice %64 {offsets = [0, 96], sizes = [1, 8], strides = [1, 1]} : vector<1x128xf32> to vector<1x8xf32>
    %89 = arith.addf %87, %88 : vector<1x8xf32>
    %90 = vector.extract_strided_slice %64 {offsets = [0, 104], sizes = [1, 8], strides = [1, 1]} : vector<1x128xf32> to vector<1x8xf32>
    %91 = arith.addf %89, %90 : vector<1x8xf32>
    %92 = vector.extract_strided_slice %64 {offsets = [0, 112], sizes = [1, 8], strides = [1, 1]} : vector<1x128xf32> to vector<1x8xf32>
    %93 = arith.addf %91, %92 : vector<1x8xf32>
    %94 = vector.extract_strided_slice %64 {offsets = [0, 120], sizes = [1, 8], strides = [1, 1]} : vector<1x128xf32> to vector<1x8xf32>
    %95 = arith.addf %93, %94 : vector<1x8xf32>
    %cst_31 = arith.constant 0.001953125 : f32
    %96 = vector.broadcast %cst_31 : f32 to vector<1x8xf32>
    %97 = arith.mulf %95, %96 : vector<1x8xf32>
    %c0_32 = arith.constant 0 : index
    %c0_33 = arith.constant 0 : index
    %98 = vector.load %arg2[%c0_32, %c0_33] : memref<1x8xf32, #tpu.memory_space<vmem>>, vector<1x8xf32>
    %cst_34 = arith.constant 9.99999974E-6 : f32
    %99 = vector.broadcast %cst_34 : f32 to vector<1x8xf32>
    %100 = arith.addf %97, %99 : vector<1x8xf32>
    %101 = math.rsqrt %100 : vector<1x8xf32>
    %102 = arith.mulf %98, %101 : vector<1x8xf32>
    %103 = tpu.concatenate %102, %102, %102, %102, %102, %102, %102, %102, %102, %102, %102, %102, %102, %102, %102, %102 in 1 : vector<1x8xf32>, vector<1x8xf32>, vector<1x8xf32>, vector<1x8xf32>, vector<1x8xf32>, vector<1x8xf32>, vector<1x8xf32>, vector<1x8xf32>, vector<1x8xf32>, vector<1x8xf32>, vector<1x8xf32>, vector<1x8xf32>, vector<1x8xf32>, vector<1x8xf32>, vector<1x8xf32>, vector<1x8xf32> -> vector<1x128xf32>
    %104 = vector.broadcast %103 : vector<1x128xf32> to vector<32x128xf32>
    %105 = arith.mulf %61, %104 : vector<32x128xf32>
    %c0_35 = arith.constant 0 : index
    %c0_36 = arith.constant 0 : index
    %106 = vector.load %arg3[%c0_35, %c0_36] : memref<1x8xf32, #tpu.memory_space<vmem>>, vector<1x8xf32>
    %107 = tpu.concatenate %106, %106, %106, %106, %106, %106, %106, %106, %106, %106, %106, %106, %106, %106, %106, %106 in 1 : vector<1x8xf32>, vector<1x8xf32>, vector<1x8xf32>, vector<1x8xf32>, vector<1x8xf32>, vector<1x8xf32>, vector<1x8xf32>, vector<1x8xf32>, vector<1x8xf32>, vector<1x8xf32>, vector<1x8xf32>, vector<1x8xf32>, vector<1x8xf32>, vector<1x8xf32>, vector<1x8xf32>, vector<1x8xf32> -> vector<1x128xf32>
    %108 = vector.broadcast %107 : vector<1x128xf32> to vector<32x128xf32>
    %109 = arith.addf %105, %108 : vector<32x128xf32>
    %cst_37 = arith.constant 0.000000e+00 : f32
    %110 = vector.broadcast %cst_37 : f32 to vector<32x128xf32>
    %111 = arith.maximumf %109, %110 : vector<32x128xf32>
    %112 = arith.truncf %111 : vector<32x128xf32> to vector<32x128xbf16>
    %113 = vector.shape_cast %112 : vector<32x128xbf16> to vector<2x16x128xbf16>
    %c0_38 = arith.constant 0 : index
    %c1_39 = arith.constant 1 : index
    %c0_40 = arith.constant 0 : index
    %114 = vector.load %arg8[%c0_38, %c1_39, %c0_40] : memref<2x18x128xbf16, #tpu.memory_space<vmem>>, vector<2x16x128xbf16>
    tpu.vector_store %arg8[%c0_38, %c1_39, %c0_40], %113 {strides = array<i32>} : memref<2x18x128xbf16, #tpu.memory_space<vmem>>, vector<2x16x128xbf16>,
    %c0_41 = arith.constant 0 : index
    %c0_42 = arith.constant 0 : index
    %c0_43 = arith.constant 0 : index
    %115 = vector.load %arg8[%c0_41, %c0_42, %c0_43] : memref<2x18x128xbf16, #tpu.memory_space<vmem>>, vector<2x16x128xbf16>
    %116 = vector.shape_cast %115 : vector<2x16x128xbf16> to vector<32x128xbf16>
    %c0_44 = arith.constant 0 : index
    %c0_45 = arith.constant 0 : index
    %c0_46 = arith.constant 0 : index
    %117 = vector.load %arg4[%c0_44, %c0_45, %c0_46] : memref<3x128x128xbf16, #tpu.memory_space<vmem>>, vector<1x128x128xbf16>
    %118 = vector.shape_cast %117 : vector<1x128x128xbf16> to vector<128x128xbf16>
    %cst_47 = arith.constant dense<0.000000e+00> : vector<32x128xf32>
    %119 = tpu.matmul %116, %118, %cst_47 {dimension_numbers = #tpu.dot_dimension_numbers<[1], [0], [0], [1], [0, 0, 1, 1], [], []>} : vector<32x128xbf16>, vector<128x128xbf16>, vector<32x128xf32> -> vector<32x128xf32>
    %c0_48 = arith.constant 0 : index
    %c1_49 = arith.constant 1 : index
    %c0_50 = arith.constant 0 : index
    %120 = vector.load %arg8[%c0_48, %c1_49, %c0_50] : memref<2x18x128xbf16, #tpu.memory_space<vmem>>, vector<2x16x128xbf16>
    %121 = vector.shape_cast %120 : vector<2x16x128xbf16> to vector<32x128xbf16>
    %c1_51 = arith.constant 1 : index
    %c0_52 = arith.constant 0 : index
    %c0_53 = arith.constant 0 : index
    %122 = vector.load %arg4[%c1_51, %c0_52, %c0_53] : memref<3x128x128xbf16, #tpu.memory_space<vmem>>, vector<1x128x128xbf16>
    %123 = vector.shape_cast %122 : vector<1x128x128xbf16> to vector<128x128xbf16>
    %cst_54 = arith.constant dense<0.000000e+00> : vector<32x128xf32>
    %124 = tpu.matmul %121, %123, %cst_54 {dimension_numbers = #tpu.dot_dimension_numbers<[1], [0], [0], [1], [0, 0, 1, 1], [], []>} : vector<32x128xbf16>, vector<128x128xbf16>, vector<32x128xf32> -> vector<32x128xf32>
    %125 = arith.addf %119, %124 : vector<32x128xf32>
    %c0_55 = arith.constant 0 : index
    %c2_56 = arith.constant 2 : index
    %c0_57 = arith.constant 0 : index
    %126 = vector.load %arg8[%c0_55, %c2_56, %c0_57] : memref<2x18x128xbf16, #tpu.memory_space<vmem>>, vector<2x16x128xbf16>
    %127 = vector.shape_cast %126 : vector<2x16x128xbf16> to vector<32x128xbf16>
    %c2_58 = arith.constant 2 : index
    %c0_59 = arith.constant 0 : index
    %c0_60 = arith.constant 0 : index
    %128 = vector.load %arg4[%c2_58, %c0_59, %c0_60] : memref<3x128x128xbf16, #tpu.memory_space<vmem>>, vector<1x128x128xbf16>
    %129 = vector.shape_cast %128 : vector<1x128x128xbf16> to vector<128x128xbf16>
    %cst_61 = arith.constant dense<0.000000e+00> : vector<32x128xf32>
    %130 = tpu.matmul %127, %129, %cst_61 {dimension_numbers = #tpu.dot_dimension_numbers<[1], [0], [0], [1], [0, 0, 1, 1], [], []>} : vector<32x128xbf16>, vector<128x128xbf16>, vector<32x128xf32> -> vector<32x128xf32>
    %131 = arith.addf %125, %130 : vector<32x128xf32>
    %cst_62 = arith.constant dense<0.000000e+00> : vector<128xf32>
    %132 = vector.multi_reduction <add>, %131, %cst_62 [0] : vector<32x128xf32> to vector<128xf32>
    %133 = vector.shape_cast %132 : vector<128xf32> to vector<1x128xf32>
    %134 = vector.extract_strided_slice %133 {offsets = [0, 0], sizes = [1, 8], strides = [1, 1]} : vector<1x128xf32> to vector<1x8xf32>
    %135 = vector.extract_strided_slice %133 {offsets = [0, 8], sizes = [1, 8], strides = [1, 1]} : vector<1x128xf32> to vector<1x8xf32>
    %136 = arith.addf %134, %135 : vector<1x8xf32>
    %137 = vector.extract_strided_slice %133 {offsets = [0, 16], sizes = [1, 8], strides = [1, 1]} : vector<1x128xf32> to vector<1x8xf32>
    %138 = arith.addf %136, %137 : vector<1x8xf32>
    %139 = vector.extract_strided_slice %133 {offsets = [0, 24], sizes = [1, 8], strides = [1, 1]} : vector<1x128xf32> to vector<1x8xf32>
    %140 = arith.addf %138, %139 : vector<1x8xf32>
    %141 = vector.extract_strided_slice %133 {offsets = [0, 32], sizes = [1, 8], strides = [1, 1]} : vector<1x128xf32> to vector<1x8xf32>
    %142 = arith.addf %140, %141 : vector<1x8xf32>
    %143 = vector.extract_strided_slice %133 {offsets = [0, 40], sizes = [1, 8], strides = [1, 1]} : vector<1x128xf32> to vector<1x8xf32>
    %144 = arith.addf %142, %143 : vector<1x8xf32>
    %145 = vector.extract_strided_slice %133 {offsets = [0, 48], sizes = [1, 8], strides = [1, 1]} : vector<1x128xf32> to vector<1x8xf32>
    %146 = arith.addf %144, %145 : vector<1x8xf32>
    %147 = vector.extract_strided_slice %133 {offsets = [0, 56], sizes = [1, 8], strides = [1, 1]} : vector<1x128xf32> to vector<1x8xf32>
    %148 = arith.addf %146, %147 : vector<1x8xf32>
    %149 = vector.extract_strided_slice %133 {offsets = [0, 64], sizes = [1, 8], strides = [1, 1]} : vector<1x128xf32> to vector<1x8xf32>
    %150 = arith.addf %148, %149 : vector<1x8xf32>
    %151 = vector.extract_strided_slice %133 {offsets = [0, 72], sizes = [1, 8], strides = [1, 1]} : vector<1x128xf32> to vector<1x8xf32>
    %152 = arith.addf %150, %151 : vector<1x8xf32>
    %153 = vector.extract_strided_slice %133 {offsets = [0, 80], sizes = [1, 8], strides = [1, 1]} : vector<1x128xf32> to vector<1x8xf32>
    %154 = arith.addf %152, %153 : vector<1x8xf32>
    %155 = vector.extract_strided_slice %133 {offsets = [0, 88], sizes = [1, 8], strides = [1, 1]} : vector<1x128xf32> to vector<1x8xf32>
    %156 = arith.addf %154, %155 : vector<1x8xf32>
    %157 = vector.extract_strided_slice %133 {offsets = [0, 96], sizes = [1, 8], strides = [1, 1]} : vector<1x128xf32> to vector<1x8xf32>
    %158 = arith.addf %156, %157 : vector<1x8xf32>
    %159 = vector.extract_strided_slice %133 {offsets = [0, 104], sizes = [1, 8], strides = [1, 1]} : vector<1x128xf32> to vector<1x8xf32>
    %160 = arith.addf %158, %159 : vector<1x8xf32>
    %161 = vector.extract_strided_slice %133 {offsets = [0, 112], sizes = [1, 8], strides = [1, 1]} : vector<1x128xf32> to vector<1x8xf32>
    %162 = arith.addf %160, %161 : vector<1x8xf32>
    %163 = vector.extract_strided_slice %133 {offsets = [0, 120], sizes = [1, 8], strides = [1, 1]} : vector<1x128xf32> to vector<1x8xf32>
    %164 = arith.addf %162, %163 : vector<1x8xf32>
    %cst_63 = arith.constant 0.001953125 : f32
    %165 = vector.broadcast %cst_63 : f32 to vector<1x8xf32>
    %166 = arith.mulf %164, %165 : vector<1x8xf32>
    %167 = tpu.concatenate %166, %166, %166, %166, %166, %166, %166, %166, %166, %166, %166, %166, %166, %166, %166, %166 in 1 : vector<1x8xf32>, vector<1x8xf32>, vector<1x8xf32>, vector<1x8xf32>, vector<1x8xf32>, vector<1x8xf32>, vector<1x8xf32>, vector<1x8xf32>, vector<1x8xf32>, vector<1x8xf32>, vector<1x8xf32>, vector<1x8xf32>, vector<1x8xf32>, vector<1x8xf32>, vector<1x8xf32>, vector<1x8xf32> -> vector<1x128xf32>
    %168 = vector.broadcast %167 : vector<1x128xf32> to vector<32x128xf32>
    %169 = arith.subf %131, %168 : vector<32x128xf32>
    %170 = arith.mulf %169, %169 : vector<32x128xf32>
    %cst_64 = arith.constant dense<0.000000e+00> : vector<128xf32>
    %171 = vector.multi_reduction <add>, %170, %cst_64 [0] : vector<32x128xf32> to vector<128xf32>
    %172 = vector.shape_cast %171 : vector<128xf32> to vector<1x128xf32>
    %173 = vector.extract_strided_slice %172 {offsets = [0, 0], sizes = [1, 8], strides = [1, 1]} : vector<1x128xf32> to vector<1x8xf32>
    %174 = vector.extract_strided_slice %172 {offsets = [0, 8], sizes = [1, 8], strides = [1, 1]} : vector<1x128xf32> to vector<1x8xf32>
    %175 = arith.addf %173, %174 : vector<1x8xf32>
    %176 = vector.extract_strided_slice %172 {offsets = [0, 16], sizes = [1, 8], strides = [1, 1]} : vector<1x128xf32> to vector<1x8xf32>
    %177 = arith.addf %175, %176 : vector<1x8xf32>
    %178 = vector.extract_strided_slice %172 {offsets = [0, 24], sizes = [1, 8], strides = [1, 1]} : vector<1x128xf32> to vector<1x8xf32>
    %179 = arith.addf %177, %178 : vector<1x8xf32>
    %180 = vector.extract_strided_slice %172 {offsets = [0, 32], sizes = [1, 8], strides = [1, 1]} : vector<1x128xf32> to vector<1x8xf32>
    %181 = arith.addf %179, %180 : vector<1x8xf32>
    %182 = vector.extract_strided_slice %172 {offsets = [0, 40], sizes = [1, 8], strides = [1, 1]} : vector<1x128xf32> to vector<1x8xf32>
    %183 = arith.addf %181, %182 : vector<1x8xf32>
    %184 = vector.extract_strided_slice %172 {offsets = [0, 48], sizes = [1, 8], strides = [1, 1]} : vector<1x128xf32> to vector<1x8xf32>
    %185 = arith.addf %183, %184 : vector<1x8xf32>
    %186 = vector.extract_strided_slice %172 {offsets = [0, 56], sizes = [1, 8], strides = [1, 1]} : vector<1x128xf32> to vector<1x8xf32>
    %187 = arith.addf %185, %186 : vector<1x8xf32>
    %188 = vector.extract_strided_slice %172 {offsets = [0, 64], sizes = [1, 8], strides = [1, 1]} : vector<1x128xf32> to vector<1x8xf32>
    %189 = arith.addf %187, %188 : vector<1x8xf32>
    %190 = vector.extract_strided_slice %172 {offsets = [0, 72], sizes = [1, 8], strides = [1, 1]} : vector<1x128xf32> to vector<1x8xf32>
    %191 = arith.addf %189, %190 : vector<1x8xf32>
    %192 = vector.extract_strided_slice %172 {offsets = [0, 80], sizes = [1, 8], strides = [1, 1]} : vector<1x128xf32> to vector<1x8xf32>
    %193 = arith.addf %191, %192 : vector<1x8xf32>
    %194 = vector.extract_strided_slice %172 {offsets = [0, 88], sizes = [1, 8], strides = [1, 1]} : vector<1x128xf32> to vector<1x8xf32>
    %195 = arith.addf %193, %194 : vector<1x8xf32>
    %196 = vector.extract_strided_slice %172 {offsets = [0, 96], sizes = [1, 8], strides = [1, 1]} : vector<1x128xf32> to vector<1x8xf32>
    %197 = arith.addf %195, %196 : vector<1x8xf32>
    %198 = vector.extract_strided_slice %172 {offsets = [0, 104], sizes = [1, 8], strides = [1, 1]} : vector<1x128xf32> to vector<1x8xf32>
    %199 = arith.addf %197, %198 : vector<1x8xf32>
    %200 = vector.extract_strided_slice %172 {offsets = [0, 112], sizes = [1, 8], strides = [1, 1]} : vector<1x128xf32> to vector<1x8xf32>
    %201 = arith.addf %199, %200 : vector<1x8xf32>
    %202 = vector.extract_strided_slice %172 {offsets = [0, 120], sizes = [1, 8], strides = [1, 1]} : vector<1x128xf32> to vector<1x8xf32>
    %203 = arith.addf %201, %202 : vector<1x8xf32>
    %cst_65 = arith.constant 0.001953125 : f32
    %204 = vector.broadcast %cst_65 : f32 to vector<1x8xf32>
    %205 = arith.mulf %203, %204 : vector<1x8xf32>
    %c0_66 = arith.constant 0 : index
    %c0_67 = arith.constant 0 : index
    %206 = vector.load %arg5[%c0_66, %c0_67] : memref<1x8xf32, #tpu.memory_space<vmem>>, vector<1x8xf32>
    %cst_68 = arith.constant 9.99999974E-6 : f32
    %207 = vector.broadcast %cst_68 : f32 to vector<1x8xf32>
    %208 = arith.addf %205, %207 : vector<1x8xf32>
    %209 = math.rsqrt %208 : vector<1x8xf32>
    %210 = arith.mulf %206, %209 : vector<1x8xf32>
    %211 = tpu.concatenate %210, %210, %210, %210, %210, %210, %210, %210, %210, %210, %210, %210, %210, %210, %210, %210 in 1 : vector<1x8xf32>, vector<1x8xf32>, vector<1x8xf32>, vector<1x8xf32>, vector<1x8xf32>, vector<1x8xf32>, vector<1x8xf32>, vector<1x8xf32>, vector<1x8xf32>, vector<1x8xf32>, vector<1x8xf32>, vector<1x8xf32>, vector<1x8xf32>, vector<1x8xf32>, vector<1x8xf32>, vector<1x8xf32> -> vector<1x128xf32>
    %212 = vector.broadcast %211 : vector<1x128xf32> to vector<32x128xf32>
    %213 = arith.mulf %169, %212 : vector<32x128xf32>
    %c0_69 = arith.constant 0 : index
    %c0_70 = arith.constant 0 : index
    %214 = vector.load %arg6[%c0_69, %c0_70] : memref<1x8xf32, #tpu.memory_space<vmem>>, vector<1x8xf32>
    %215 = tpu.concatenate %214, %214, %214, %214, %214, %214, %214, %214, %214, %214, %214, %214, %214, %214, %214, %214 in 1 : vector<1x8xf32>, vector<1x8xf32>, vector<1x8xf32>, vector<1x8xf32>, vector<1x8xf32>, vector<1x8xf32>, vector<1x8xf32>, vector<1x8xf32>, vector<1x8xf32>, vector<1x8xf32>, vector<1x8xf32>, vector<1x8xf32>, vector<1x8xf32>, vector<1x8xf32>, vector<1x8xf32>, vector<1x8xf32> -> vector<1x128xf32>
    %216 = vector.broadcast %215 : vector<1x128xf32> to vector<32x128xf32>
    %217 = arith.addf %213, %216 : vector<32x128xf32>
    %218 = arith.addf %217, %3 : vector<32x128xf32>
    %cst_71 = arith.constant 0.000000e+00 : f32
    %219 = vector.broadcast %cst_71 : f32 to vector<32x128xf32>
    %220 = arith.maximumf %218, %219 : vector<32x128xf32>
    %c0_72 = arith.constant 0 : index
    %c0_73 = arith.constant 0 : index
    %221 = vector.load %arg7[%c0_72, %c0_73] : memref<32x128xf32, #tpu.memory_space<vmem>>, vector<32x128xf32>
    tpu.vector_store %arg7[%c0_72, %c0_73], %220 {strides = array<i32>} : memref<32x128xf32, #tpu.memory_space<vmem>>, vector<32x128xf32>,
    return
  }
}

</mosaic_0001>

<llo_original>
// kernel: basic_block_forward.1
$region0: #{basic_block_forward.1}
  #allocation0 [shape = 'u32[]', space=smem, size = 0x4, offset = 0x4, fixed_abs, tag = 'smem constant byte address 0x4 - core index']
  #allocation1 [shape = 'u32[144,128]{1,0:T(1,128)}', space=vmem, size = 0x12000, scoped, tag = 'internal scratch']
  #allocation2 [shape = 'bf16[2,18,128]{2,1,0:T(8,128)(2,1)}', space=vmem, size = 0x3000, scoped, tag = 'scratch operand']
  %s0 = inlined_call_operand.vmem [shape: f32[32,128], index: 0, kind: input, shape index: {}]
  %s1 = inlined_call_operand.vmem [shape: bf16[3,128,128], index: 1, kind: input, shape index: {}]
  %s2 = inlined_call_operand.vmem [shape: f32[1,8], index: 2, kind: input, shape index: {}]
  %s3 = inlined_call_operand.vmem [shape: f32[1,8], index: 3, kind: input, shape index: {}]
  %s4 = inlined_call_operand.vmem [shape: bf16[3,128,128], index: 4, kind: input, shape index: {}]
  %s5 = inlined_call_operand.vmem [shape: f32[1,8], index: 5, kind: input, shape index: {}]
  %s6 = inlined_call_operand.vmem [shape: f32[1,8], index: 6, kind: input, shape index: {}]
  %s7 = inlined_call_operand.vmem [shape: f32[32,128], index: 7, kind: output, shape index: {}]
  %s8 = sld [smem:[#allocation0]]
  $region38: #{basic_block_forward.1} parent=0
    _
  %s10 = ssub.s32 1, %s8
  %s11 = scalar_select 0, %s10, %s8
  // Predicated region
  $region2: #{basic_block_forward.1} parent=0 // pred_check
    _
  $region3: #{basic_block_forward.1} parent=0 // pred_check_branch
    %13 = sbr.rel (0) target = $region5
  $region4: #{basic_block_forward.1} parent=0 // pred_region
    _
  $region5: #{basic_block_forward.1} parent=0 // pred_fallthru
    _
  // Predicated region
  $region6: #{basic_block_forward.1} parent=0 // pred_check
    _
  $region7: #{basic_block_forward.1} parent=0 // pred_check_branch
    %15 = sbr.rel (0) target = $region9
  $region8: #{basic_block_forward.1} parent=0 // pred_region
    _
  $region9: #{basic_block_forward.1} parent=0 // pred_fallthru
    _
  // Predicated region
  $region10: #{basic_block_forward.1} parent=0 // pred_check
    _
  $region11: #{basic_block_forward.1} parent=0 // pred_check_branch
    %17 = sbr.rel (0) target = $region13
  $region12: #{basic_block_forward.1} parent=0 // pred_region
    _
  $region13: #{basic_block_forward.1} parent=0 // pred_fallthru
    _
  // Predicated region
  $region14: #{basic_block_forward.1} parent=0 // pred_check
    _
  $region15: #{basic_block_forward.1} parent=0 // pred_check_branch
    %19 = sbr.rel (0) target = $region17
  $region16: #{basic_block_forward.1} parent=0 // pred_region
    _
  $region17: #{basic_block_forward.1} parent=0 // pred_fallthru
    _
  // Predicated region
  $region18: #{basic_block_forward.1} parent=0 // pred_check
    _
  $region19: #{basic_block_forward.1} parent=0 // pred_check_branch
    %21 = sbr.rel (0) target = $region21
  $region20: #{basic_block_forward.1} parent=0 // pred_region
    _
  $region21: #{basic_block_forward.1} parent=0 // pred_fallthru
    _
  // Predicated region
  $region22: #{basic_block_forward.1} parent=0 // pred_check
    _
  $region23: #{basic_block_forward.1} parent=0 // pred_check_branch
    %23 = sbr.rel (0) target = $region25
  $region24: #{basic_block_forward.1} parent=0 // pred_region
    _
  $region25: #{basic_block_forward.1} parent=0 // pred_fallthru
    _
  // Predicated region
  $region26: #{basic_block_forward.1} parent=0 // pred_check
    _
  $region27: #{basic_block_forward.1} parent=0 // pred_check_branch
    %25 = sbr.rel (0) target = $region29
  $region28: #{basic_block_forward.1} parent=0 // pred_region
    _
  $region29: #{basic_block_forward.1} parent=0 // pred_fallthru
    _
  %vm27 = vcmask 1040384
  %vm28 = vsmask.f32 256
  %vm29 = vmand %vm27, %vm28
  %v30 = vld [vmem:[#allocation2] sm:$0x1]
  %v31 = vsel %vm29, 0, %v30
  %32 = vst [vmem:[#allocation2] sm:$0x1] %v31
  %v33 = vld [vmem:[#allocation2 + $0xc] sm:$0x1]
  %v34 = vsel %vm29, 0, %v33
  %35 = vst [vmem:[#allocation2 + $0xc] sm:$0x1] %v34
  %vm36 = vsmask.f32 7938
  %vm37 = vmand %vm27, %vm36
  %v38 = vld [vmem:[#allocation2 + $0x8] sm:$0x1]
  %v39 = vsel %vm37, 0, %v38
  %40 = vst [vmem:[#allocation2 + $0x8] sm:$0x1] %v39
  %v41 = vld [vmem:[#allocation2 + $0x14] sm:$0x1]
  %v42 = vsel %vm37, 0, %v41
  %43 = vst [vmem:[#allocation2 + $0x14] sm:$0x1] %v42
  %v44 = vld [vmem:[%s0] sm:$0xff]
  %v45 = vld [vmem:[%s0 + $0x8] sm:$0xff]
  %v46 = vld [vmem:[%s0 + $0x10] sm:$0xff]
  %v47 = vld [vmem:[%s0 + $0x18] sm:$0xff]
  %v48 = vpack.c.bf16 %v45, %v44
  %v49 = vpack.c.bf16 %v47, %v46
  %v52 = vunpack.c.l.b16 %v48
  %v53 = vunpack.c.h.b16 %v48
  %v54 = vunpack.c.l.b16 %v49
  %v55 = vunpack.c.h.b16 %v49
  %v56 = vpack.c.b16 %v52, %v52
  %v57 = vpack.c.b16 %v53, %v53
  %v58 = vpack.c.b16 %v54, %v54
  %v59 = vpack.c.b16 %v55, %v55
  %vm60 = vsmask.f32 4368
  %vm61 = vmor %vm28, %vm60
  %v63 = vshrl.u32 %v56, 16
  %v65 = vrot.slane %v63, 7
  %v66 = vshll.u32 %v56, 16
  %v68 = vor.u32 %v65, %v66
  %v69 = vrot.slane %v65, 4
  %v71 = vshrl.u32 %v57, 16
  %v73 = vrot.slane %v71, 7
  %v74 = vshll.u32 %v57, 16
  %v76 = vor.u32 %v73, %v74
  %v77 = vsel %vm61, %v69, %v76
  %v78 = vrot.slane %v73, 4
  %v80 = vshrl.u32 %v58, 16
  %v82 = vrot.slane %v80, 7
  %v83 = vshll.u32 %v58, 16
  %v85 = vor.u32 %v82, %v83
  %v86 = vrot.slane %v82, 4
  %v88 = vshrl.u32 %v59, 16
  %v90 = vrot.slane %v88, 7
  %v91 = vshll.u32 %v59, 16
  %v93 = vor.u32 %v90, %v91
  %v94 = vsel %vm61, %v86, %v93
  %v95 = vrot.slane %v90, 4
  %vm102 = vcmask 1043456
  %vm103 = vmand %vm102, %vm36
  %v104 = vld [vmem:[#allocation2] sm:$0xf]
  %v105 = vsel %vm103, %v68, %v104
  %106 = vst [vmem:[#allocation2] sm:$0xf] %v105
  %107 = vst [vmem:[#allocation2 + $0x4] sm:$0xf] %v77
  %v108 = vld [vmem:[#allocation2 + $0x8] sm:$0x1]
  %v109 = vsel %vm29, %v78, %v108
  %110 = vst [vmem:[#allocation2 + $0x8] sm:$0x1] %v109
  %v111 = vld [vmem:[#allocation2 + $0xc] sm:$0xf]
  %v112 = vsel %vm103, %v85, %v111
  %113 = vst [vmem:[#allocation2 + $0xc] sm:$0xf] %v112
  %114 = vst [vmem:[#allocation2 + $0x10] sm:$0xf] %v94
  %v115 = vld [vmem:[#allocation2 + $0x14] sm:$0x1]
  %v116 = vsel %vm29, %v95, %v115
  %117 = vst [vmem:[#allocation2 + $0x14] sm:$0x1] %v116
  %v118 = vld [vmem:[#allocation2] sm:$0xf]
  %v119 = vld [vmem:[#allocation2 + $0x4] sm:$0xf]
  %v120 = vld [vmem:[#allocation2 + $0xc] sm:$0xf]
  %v121 = vld [vmem:[#allocation2 + $0x10] sm:$0xf]
  %v122 = vld [vmem:[%s1] sm:$0xf]
  %v123 = vld [vmem:[%s1 + $0x4] sm:$0xf]
  %v124 = vld [vmem:[%s1 + $0x8] sm:$0xf]
  %v125 = vld [vmem:[%s1 + $0xc] sm:$0xf]
  %v126 = vld [vmem:[%s1 + $0x10] sm:$0xf]
  %v127 = vld [vmem:[%s1 + $0x14] sm:$0xf]
  %v128 = vld [vmem:[%s1 + $0x18] sm:$0xf]
  %v129 = vld [vmem:[%s1 + $0x1c] sm:$0xf]
  %v130 = vld [vmem:[%s1 + $0x20] sm:$0xf]
  %v131 = vld [vmem:[%s1 + $0x24] sm:$0xf]
  %v132 = vld [vmem:[%s1 + $0x28] sm:$0xf]
  %v133 = vld [vmem:[%s1 + $0x2c] sm:$0xf]
  %v134 = vld [vmem:[%s1 + $0x30] sm:$0xf]
  %v135 = vld [vmem:[%s1 + $0x34] sm:$0xf]
  %v136 = vld [vmem:[%s1 + $0x38] sm:$0xf]
  %v137 = vld [vmem:[%s1 + $0x3c] sm:$0xf]
  %v138 = vld [vmem:[#allocation2 + $0x8] sm:$0x1]
  %v139 = vld [vmem:[#allocation2 + $0x14] sm:$0x1]
  %vm140 = vsmask.f32 3328
  %vm141 = vsmask.f32 7440
  %vm142 = vmor %vm140, %vm141
  %v144 = vshrl.u32 %v118, 16
  %v146 = vrot.slane %v144, 4
  %v147 = vshll.u32 %v118, 16
  %v149 = vrot.slane %v147, 5
  %v150 = vor.u32 %v146, %v149
  %v151 = vrot.slane %v150, 4
  %v153 = vshll.u32 %v119, 16
  %v155 = vrot.slane %v153, 5
  %v156 = vsel %vm142, %v151, %v155
  %v157 = vshrl.u32 %v119, 16
  %v159 = vrot.slane %v157, 4
  %v160 = vor.u32 %v159, %v155
  %v161 = vrot.slane %v160, 4
  %v163 = vshll.u32 %v138, 16
  %v165 = vrot.slane %v163, 5
  %v166 = vsel %vm142, %v161, %v165
  %v168 = vshrl.u32 %v120, 16
  %v170 = vrot.slane %v168, 4
  %v171 = vshll.u32 %v120, 16
  %v173 = vrot.slane %v171, 5
  %v174 = vor.u32 %v170, %v173
  %v175 = vrot.slane %v174, 4
  %v177 = vshll.u32 %v121, 16
  %v179 = vrot.slane %v177, 5
  %v180 = vsel %vm142, %v175, %v179
  %v181 = vshrl.u32 %v121, 16
  %v183 = vrot.slane %v181, 4
  %v184 = vor.u32 %v183, %v179
  %v185 = vrot.slane %v184, 4
  %v187 = vshll.u32 %v139, 16
  %v189 = vrot.slane %v187, 5
  %v190 = vsel %vm142, %v185, %v189
  %s191 = scalar_lea.vmem %s1, 64
  %v192 = vld [vmem:[%s191] sm:$0xf]
  %v193 = vld [vmem:[%s191 + $0x4] sm:$0xf]
  %v194 = vld [vmem:[%s191 + $0x8] sm:$0xf]
  %v195 = vld [vmem:[%s191 + $0xc] sm:$0xf]
  %v196 = vld [vmem:[%s191 + $0x10] sm:$0xf]
  %v197 = vld [vmem:[%s191 + $0x14] sm:$0xf]
  %v198 = vld [vmem:[%s191 + $0x18] sm:$0xf]
  %v199 = vld [vmem:[%s191 + $0x1c] sm:$0xf]
  %v200 = vld [vmem:[%s191 + $0x20] sm:$0xf]
  %v201 = vld [vmem:[%s191 + $0x24] sm:$0xf]
  %v202 = vld [vmem:[%s191 + $0x28] sm:$0xf]
  %v203 = vld [vmem:[%s191 + $0x2c] sm:$0xf]
  %v204 = vld [vmem:[%s191 + $0x30] sm:$0xf]
  %v205 = vld [vmem:[%s191 + $0x34] sm:$0xf]
  %v206 = vld [vmem:[%s191 + $0x38] sm:$0xf]
  %v207 = vld [vmem:[%s191 + $0x3c] sm:$0xf]
  %v208 = vunpack.c.l.b16 %v156
  %v209 = vunpack.c.l.b16 %v166
  %v210 = vunpack.c.l.b16 %v180
  %v211 = vunpack.c.l.b16 %v190
  %v212 = vpack.c.b16 %v209, %v208
  %v213 = vpack.c.b16 %v211, %v210
  %v232 = vunpack.c.l.b16 %v192
  %v233 = vunpack.c.l.b16 %v193
  %v234 = vunpack.c.l.b16 %v194
  %v235 = vunpack.c.l.b16 %v195
  %v236 = vunpack.c.l.b16 %v196
  %v237 = vunpack.c.l.b16 %v197
  %v238 = vunpack.c.l.b16 %v198
  %v239 = vunpack.c.l.b16 %v199
  %v240 = vunpack.c.l.b16 %v200
  %v241 = vunpack.c.l.b16 %v201
  %v242 = vunpack.c.l.b16 %v202
  %v243 = vunpack.c.l.b16 %v203
  %v244 = vunpack.c.l.b16 %v204
  %v245 = vunpack.c.l.b16 %v205
  %v246 = vunpack.c.l.b16 %v206
  %v247 = vunpack.c.l.b16 %v207
  %v248 = vpack.c.b16 %v233, %v232
  %v249 = vpack.c.b16 %v235, %v234
  %v250 = vpack.c.b16 %v237, %v236
  %v251 = vpack.c.b16 %v239, %v238
  %v252 = vpack.c.b16 %v241, %v240
  %v253 = vpack.c.b16 %v243, %v242
  %v254 = vpack.c.b16 %v245, %v244
  %v255 = vpack.c.b16 %v247, %v246
  %264 = vmatprep.subr.bf16.mxu0 0
  %265 = vmatpush1.bf16.msra.mxu0 %v255
  %266 = vmatprep.subr.bf16.mxu0 0
  %267 = vmatpush1.bf16.msra.mxu0 %v254
  %268 = vmatprep.subr.bf16.mxu0 0
  %269 = vmatpush1.bf16.msra.mxu0 %v253
  %270 = vmatprep.subr.bf16.mxu0 0
  %271 = vmatpush1.bf16.msra.mxu0 %v252
  %272 = vmatprep.subr.bf16.mxu0 0
  %273 = vmatpush1.bf16.msra.mxu0 %v251
  %274 = vmatprep.subr.bf16.mxu0 0
  %275 = vmatpush1.bf16.msra.mxu0 %v250
  %276 = vmatprep.subr.bf16.mxu0 0
  %277 = vmatpush1.bf16.msra.mxu0 %v249
  %278 = vmatprep.subr.bf16.mxu0 0
  %279 = vmatpush1.bf16.msra.mxu0 %v248
  %280 = vmatprep.subr.bf16.mxu0 0
  %281 = vmatpush2.bf16.msra.mxu0 0
  %282 = vmatprep.subr.bf16.mxu0 0
  %283 = vmatpush2.bf16.msra.mxu0 0
  %284 = vmatprep.subr.bf16.mxu0 0
  %285 = vmatpush2.bf16.msra.mxu0 0
  %286 = vmatprep.subr.bf16.mxu0 0
  %287 = vmatpush2.bf16.msra.mxu0 0
  %288 = vmatprep.subr.bf16.mxu0 0
  %289 = vmatpush2.bf16.msra.mxu0 0
  %290 = vmatprep.subr.bf16.mxu0 0
  %291 = vmatpush2.bf16.msra.mxu0 0
  %292 = vmatprep.subr.bf16.mxu0 0
  %293 = vmatpush2.bf16.msra.mxu0 0
  %294 = vmatprep.subr.bf16.mxu0 0
  %295 = vmatpush2.bf16.msra.mxu0 0
  %296 = vmatprep.mubr.bf16.mxu0 0
  %297 = vmatmul.mubr.bf16.gmra.mxu0 %v212
  %v298 = vpop.f32.mrf.mxu0
  %v299 = vadd.f32 0.0, %v298
  %v300 = vpop.f32.mrf.mxu0
  %v301 = vpop.f32.mrf.mxu0
  %v302 = vadd.f32 0.0, %v301
  %v303 = vpop.f32.mrf.mxu0
  %304 = vmatprep.mubr.bf16.mxu0 0
  %305 = vmatmul.mubr.bf16.gmra.mxu0 %v213
  %v306 = vpop.f32.mrf.mxu0
  %v307 = vadd.f32 0.0, %v306
  %v308 = vpop.f32.mrf.mxu0
  %v309 = vpop.f32.mrf.mxu0
  %v310 = vadd.f32 0.0, %v309
  %v311 = vpop.f32.mrf.mxu0
  %312 = vdwg.mxu0
  %v317 = vunpack.c.l.b16 %v118
  %v318 = vunpack.c.l.b16 %v119
  %v319 = vunpack.c.l.b16 %v120
  %v320 = vunpack.c.l.b16 %v121
  %v321 = vpack.c.b16 %v318, %v317
  %v322 = vpack.c.b16 %v320, %v319
  %v341 = vunpack.c.l.b16 %v122
  %v342 = vunpack.c.l.b16 %v123
  %v343 = vunpack.c.l.b16 %v124
  %v344 = vunpack.c.l.b16 %v125
  %v345 = vunpack.c.l.b16 %v126
  %v346 = vunpack.c.l.b16 %v127
  %v347 = vunpack.c.l.b16 %v128
  %v348 = vunpack.c.l.b16 %v129
  %v349 = vunpack.c.l.b16 %v130
  %v350 = vunpack.c.l.b16 %v131
  %v351 = vunpack.c.l.b16 %v132
  %v352 = vunpack.c.l.b16 %v133
  %v353 = vunpack.c.l.b16 %v134
  %v354 = vunpack.c.l.b16 %v135
  %v355 = vunpack.c.l.b16 %v136
  %v356 = vunpack.c.l.b16 %v137
  %v357 = vpack.c.b16 %v342, %v341
  %v358 = vpack.c.b16 %v344, %v343
  %v359 = vpack.c.b16 %v346, %v345
  %v360 = vpack.c.b16 %v348, %v347
  %v361 = vpack.c.b16 %v350, %v349
  %v362 = vpack.c.b16 %v352, %v351
  %v363 = vpack.c.b16 %v354, %v353
  %v364 = vpack.c.b16 %v356, %v355
  %373 = vmatprep.subr.bf16.mxu0 0
  %374 = vmatpush1.bf16.msra.mxu0 %v364
  %375 = vmatprep.subr.bf16.mxu0 0
  %376 = vmatpush1.bf16.msra.mxu0 %v363
  %377 = vmatprep.subr.bf16.mxu0 0
  %378 = vmatpush1.bf16.msra.mxu0 %v362
  %379 = vmatprep.subr.bf16.mxu0 0
  %380 = vmatpush1.bf16.msra.mxu0 %v361
  %381 = vmatprep.subr.bf16.mxu0 0
  %382 = vmatpush1.bf16.msra.mxu0 %v360
  %383 = vmatprep.subr.bf16.mxu0 0
  %384 = vmatpush1.bf16.msra.mxu0 %v359
  %385 = vmatprep.subr.bf16.mxu0 0
  %386 = vmatpush1.bf16.msra.mxu0 %v358
  %387 = vmatprep.subr.bf16.mxu0 0
  %388 = vmatpush1.bf16.msra.mxu0 %v357
  %389 = vmatprep.subr.bf16.mxu0 0
  %390 = vmatpush2.bf16.msra.mxu0 0
  %391 = vmatprep.subr.bf16.mxu0 0
  %392 = vmatpush2.bf16.msra.mxu0 0
  %393 = vmatprep.subr.bf16.mxu0 0
  %394 = vmatpush2.bf16.msra.mxu0 0
  %395 = vmatprep.subr.bf16.mxu0 0
  %396 = vmatpush2.bf16.msra.mxu0 0
  %397 = vmatprep.subr.bf16.mxu0 0
  %398 = vmatpush2.bf16.msra.mxu0 0
  %399 = vmatprep.subr.bf16.mxu0 0
  %400 = vmatpush2.bf16.msra.mxu0 0
  %401 = vmatprep.subr.bf16.mxu0 0
  %402 = vmatpush2.bf16.msra.mxu0 0
  %403 = vmatprep.subr.bf16.mxu0 0
  %404 = vmatpush2.bf16.msra.mxu0 0
  %405 = vmatprep.mubr.bf16.mxu0 0
  %406 = vmatmul.mubr.bf16.gmra.mxu0 %v321
  %v407 = vpop.f32.mrf.mxu0
  %v408 = vadd.f32 %v299, %v407
  %v409 = vpop.f32.mrf.mxu0
  %v410 = vpop.f32.mrf.mxu0
  %v411 = vadd.f32 %v302, %v410
  %v412 = vpop.f32.mrf.mxu0
  %413 = vmatprep.mubr.bf16.mxu0 0
  %414 = vmatmul.mubr.bf16.gmra.mxu0 %v322
  %v415 = vpop.f32.mrf.mxu0
  %v416 = vadd.f32 %v307, %v415
  %v417 = vpop.f32.mrf.mxu0
  %v418 = vpop.f32.mrf.mxu0
  %v419 = vadd.f32 %v310, %v418
  %v420 = vpop.f32.mrf.mxu0
  %421 = vdwg.mxu0
  %v422 = vld [vmem:[#allocation2] sm:$0xe]
  %v423 = vld [vmem:[#allocation2 + $0xc] sm:$0xe]
  %vm428 = vcmask 1042432
  %vm429 = vcmask 1046532
  %vm430 = vmor %vm428, %vm429
  %v431 = vrot.slane %v422, 5
  %v432 = vrot.slane %v431, 4
  %v433 = vrot.slane %v119, 5
  %v434 = vsel %vm430, %v432, %v433
  %v435 = vrot.slane %v433, 4
  %v436 = vrot.slane %v138, 5
  %v437 = vsel %vm430, %v435, %v436
  %v438 = vrot.slane %v423, 5
  %v439 = vrot.slane %v438, 4
  %v440 = vrot.slane %v121, 5
  %v441 = vsel %vm430, %v439, %v440
  %v442 = vrot.slane %v440, 4
  %v443 = vrot.slane %v139, 5
  %v444 = vsel %vm430, %v442, %v443
  %s445 = scalar_lea.vmem %s1, 128
  %v446 = vld [vmem:[%s445] sm:$0xf]
  %v447 = vld [vmem:[%s445 + $0x4] sm:$0xf]
  %v448 = vld [vmem:[%s445 + $0x8] sm:$0xf]
  %v449 = vld [vmem:[%s445 + $0xc] sm:$0xf]
  %v450 = vld [vmem:[%s445 + $0x10] sm:$0xf]
  %v451 = vld [vmem:[%s445 + $0x14] sm:$0xf]
  %v452 = vld [vmem:[%s445 + $0x18] sm:$0xf]
  %v453 = vld [vmem:[%s445 + $0x1c] sm:$0xf]
  %v454 = vld [vmem:[%s445 + $0x20] sm:$0xf]
  %v455 = vld [vmem:[%s445 + $0x24] sm:$0xf]
  %v456 = vld [vmem:[%s445 + $0x28] sm:$0xf]
  %v457 = vld [vmem:[%s445 + $0x2c] sm:$0xf]
  %v458 = vld [vmem:[%s445 + $0x30] sm:$0xf]
  %v459 = vld [vmem:[%s445 + $0x34] sm:$0xf]
  %v460 = vld [vmem:[%s445 + $0x38] sm:$0xf]
  %v461 = vld [vmem:[%s445 + $0x3c] sm:$0xf]
  %v462 = vunpack.c.l.b16 %v434
  %v463 = vunpack.c.l.b16 %v437
  %v464 = vunpack.c.l.b16 %v441
  %v465 = vunpack.c.l.b16 %v444
  %v466 = vpack.c.b16 %v463, %v462
  %v467 = vpack.c.b16 %v465, %v464
  %v486 = vunpack.c.l.b16 %v446
  %v487 = vunpack.c.l.b16 %v447
  %v488 = vunpack.c.l.b16 %v448
  %v489 = vunpack.c.l.b16 %v449
  %v490 = vunpack.c.l.b16 %v450
  %v491 = vunpack.c.l.b16 %v451
  %v492 = vunpack.c.l.b16 %v452
  %v493 = vunpack.c.l.b16 %v453
  %v494 = vunpack.c.l.b16 %v454
  %v495 = vunpack.c.l.b16 %v455
  %v496 = vunpack.c.l.b16 %v456
  %v497 = vunpack.c.l.b16 %v457
  %v498 = vunpack.c.l.b16 %v458
  %v499 = vunpack.c.l.b16 %v459
  %v500 = vunpack.c.l.b16 %v460
  %v501 = vunpack.c.l.b16 %v461
  %v502 = vpack.c.b16 %v487, %v486
  %v503 = vpack.c.b16 %v489, %v488
  %v504 = vpack.c.b16 %v491, %v490
  %v505 = vpack.c.b16 %v493, %v492
  %v506 = vpack.c.b16 %v495, %v494
  %v507 = vpack.c.b16 %v497, %v496
  %v508 = vpack.c.b16 %v499, %v498
  %v509 = vpack.c.b16 %v501, %v500
  %518 = vmatprep.subr.bf16.mxu0 0
  %519 = vmatpush1.bf16.msra.mxu0 %v509
  %520 = vmatprep.subr.bf16.mxu0 0
  %521 = vmatpush1.bf16.msra.mxu0 %v508
  %522 = vmatprep.subr.bf16.mxu0 0
  %523 = vmatpush1.bf16.msra.mxu0 %v507
  %524 = vmatprep.subr.bf16.mxu0 0
  %525 = vmatpush1.bf16.msra.mxu0 %v506
  %526 = vmatprep.subr.bf16.mxu0 0
  %527 = vmatpush1.bf16.msra.mxu0 %v505
  %528 = vmatprep.subr.bf16.mxu0 0
  %529 = vmatpush1.bf16.msra.mxu0 %v504
  %530 = vmatprep.subr.bf16.mxu0 0
  %531 = vmatpush1.bf16.msra.mxu0 %v503
  %532 = vmatprep.subr.bf16.mxu0 0
  %533 = vmatpush1.bf16.msra.mxu0 %v502
  %534 = vmatprep.subr.bf16.mxu0 0
  %535 = vmatpush2.bf16.msra.mxu0 0
  %536 = vmatprep.subr.bf16.mxu0 0
  %537 = vmatpush2.bf16.msra.mxu0 0
  %538 = vmatprep.subr.bf16.mxu0 0
  %539 = vmatpush2.bf16.msra.mxu0 0
  %540 = vmatprep.subr.bf16.mxu0 0
  %541 = vmatpush2.bf16.msra.mxu0 0
  %542 = vmatprep.subr.bf16.mxu0 0
  %543 = vmatpush2.bf16.msra.mxu0 0
  %544 = vmatprep.subr.bf16.mxu0 0
  %545 = vmatpush2.bf16.msra.mxu0 0
  %546 = vmatprep.subr.bf16.mxu0 0
  %547 = vmatpush2.bf16.msra.mxu0 0
  %548 = vmatprep.subr.bf16.mxu0 0
  %549 = vmatpush2.bf16.msra.mxu0 0
  %550 = vmatprep.mubr.bf16.mxu0 0
  %551 = vmatmul.mubr.bf16.gmra.mxu0 %v466
  %v552 = vpop.f32.mrf.mxu0
  %v553 = vadd.f32 0.0, %v552
  %v554 = vpop.f32.mrf.mxu0
  %v555 = vpop.f32.mrf.mxu0
  %v556 = vadd.f32 0.0, %v555
  %v557 = vpop.f32.mrf.mxu0
  %558 = vmatprep.mubr.bf16.mxu0 0
  %559 = vmatmul.mubr.bf16.gmra.mxu0 %v467
  %v560 = vpop.f32.mrf.mxu0
  %v561 = vadd.f32 0.0, %v560
  %v562 = vpop.f32.mrf.mxu0
  %v563 = vpop.f32.mrf.mxu0
  %v564 = vadd.f32 0.0, %v563
  %v565 = vpop.f32.mrf.mxu0
  %566 = vdwg.mxu0
  %v567 = vadd.f32 %v408, %v553
  %v568 = vadd.f32 %v411, %v556
  %v569 = vadd.f32 %v416, %v561
  %v570 = vadd.f32 %v419, %v564
  %v571 = vadd.f32 %v567, %v568
  %v572 = vadd.f32 %v571, %v569
  %v573 = vadd.f32 %v572, %v570
  %v574 = vrot.slane %v573, 4
  %v575 = vadd.f32 %v573, %v574
  %v576 = vrot.slane %v575, 2
  %v577 = vadd.f32 %v575, %v576
  %v578 = vrot.slane %v577, 1
  %v579 = vadd.f32 %v577, %v578
  %581 = vrot.lane.b32.xlu0 %v579, 120
  %v582 = vpop.permute.xlu0 %581
  %v584 = vadd.f32 %v579, %v582
  %585 = vrot.lane.b32.xlu0 %v579, 112
  %v586 = vpop.permute.xlu0 %585
  %v588 = vadd.f32 %v584, %v586
  %589 = vrot.lane.b32.xlu0 %v579, 104
  %v590 = vpop.permute.xlu0 %589
  %v592 = vadd.f32 %v588, %v590
  %593 = vrot.lane.b32.xlu0 %v579, 96
  %v594 = vpop.permute.xlu0 %593
  %v596 = vadd.f32 %v592, %v594
  %597 = vrot.lane.b32.xlu0 %v579, 88
  %v598 = vpop.permute.xlu0 %597
  %v600 = vadd.f32 %v596, %v598
  %601 = vrot.lane.b32.xlu0 %v579, 80
  %v602 = vpop.permute.xlu0 %601
  %v604 = vadd.f32 %v600, %v602
  %605 = vrot.lane.b32.xlu0 %v579, 72
  %v606 = vpop.permute.xlu0 %605
  %v608 = vadd.f32 %v604, %v606
  %609 = vrot.lane.b32.xlu0 %v579, 64
  %v610 = vpop.permute.xlu0 %609
  %v612 = vadd.f32 %v608, %v610
  %613 = vrot.lane.b32.xlu0 %v579, 56
  %v614 = vpop.permute.xlu0 %613
  %v616 = vadd.f32 %v612, %v614
  %617 = vrot.lane.b32.xlu0 %v579, 48
  %v618 = vpop.permute.xlu0 %617
  %v620 = vadd.f32 %v616, %v618
  %621 = vrot.lane.b32.xlu0 %v579, 40
  %v622 = vpop.permute.xlu0 %621
  %v624 = vadd.f32 %v620, %v622
  %625 = vrot.lane.b32.xlu0 %v579, 32
  %v626 = vpop.permute.xlu0 %625
  %v628 = vadd.f32 %v624, %v626
  %629 = vrot.lane.b32.xlu0 %v579, 24
  %v630 = vpop.permute.xlu0 %629
  %v632 = vadd.f32 %v628, %v630
  %633 = vrot.lane.b32.xlu0 %v579, 16
  %v634 = vpop.permute.xlu0 %633
  %v636 = vadd.f32 %v632, %v634
  %637 = vrot.lane.b32.xlu0 %v579, 8
  %v638 = vpop.permute.xlu0 %637
  %v640 = vadd.f32 %v636, %v638
  %v641 = vmul.f32 %v640, 0.001953125
  %643 = vrot.lane.b32.xlu0 %v641, 8
  %v644 = vpop.permute.xlu0 %643
  %646 = vrot.lane.b32.xlu0 %v641, 16
  %v647 = vpop.permute.xlu0 %646
  %649 = vrot.lane.b32.xlu0 %v641, 24
  %v650 = vpop.permute.xlu0 %649
  %652 = vrot.lane.b32.xlu0 %v641, 32
  %v653 = vpop.permute.xlu0 %652
  %655 = vrot.lane.b32.xlu0 %v641, 40
  %v656 = vpop.permute.xlu0 %655
  %658 = vrot.lane.b32.xlu0 %v641, 48
  %v659 = vpop.permute.xlu0 %658
  %661 = vrot.lane.b32.xlu0 %v641, 56
  %v662 = vpop.permute.xlu0 %661
  %664 = vrot.lane.b32.xlu0 %v641, 64
  %v665 = vpop.permute.xlu0 %664
  %667 = vrot.lane.b32.xlu0 %v641, 72
  %v668 = vpop.permute.xlu0 %667
  %670 = vrot.lane.b32.xlu0 %v641, 80
  %v671 = vpop.permute.xlu0 %670
  %673 = vrot.lane.b32.xlu0 %v641, 88
  %v674 = vpop.permute.xlu0 %673
  %676 = vrot.lane.b32.xlu0 %v641, 96
  %v677 = vpop.permute.xlu0 %676
  %679 = vrot.lane.b32.xlu0 %v641, 104
  %v680 = vpop.permute.xlu0 %679
  %682 = vrot.lane.b32.xlu0 %v641, 112
  %v683 = vpop.permute.xlu0 %682
  %685 = vrot.lane.b32.xlu0 %v641, 120
  %v686 = vpop.permute.xlu0 %685
  %vm688 = vcmask 64512
  %v689 = vsel %vm688, %v641, %v644
  %vm690 = vcmask 130048
  %v691 = vsel %vm690, %v689, %v647
  %vm692 = vcmask 195584
  %v693 = vsel %vm692, %v691, %v650
  %vm694 = vcmask 261120
  %v695 = vsel %vm694, %v693, %v653
  %vm696 = vcmask 326656
  %v697 = vsel %vm696, %v695, %v656
  %vm698 = vcmask 392192
  %v699 = vsel %vm698, %v697, %v659
  %vm700 = vcmask 457728
  %v701 = vsel %vm700, %v699, %v662
  %vm702 = vcmask 523264
  %v703 = vsel %vm702, %v701, %v665
  %vm704 = vcmask 588800
  %v705 = vsel %vm704, %v703, %v668
  %vm706 = vcmask 654336
  %v707 = vsel %vm706, %v705, %v671
  %vm708 = vcmask 719872
  %v709 = vsel %vm708, %v707, %v674
  %vm710 = vcmask 785408
  %v711 = vsel %vm710, %v709, %v677
  %vm712 = vcmask 850944
  %v713 = vsel %vm712, %v711, %v680
  %vm714 = vcmask 916480
  %v715 = vsel %vm714, %v713, %v683
  %vm716 = vcmask 982016
  %v717 = vsel %vm716, %v715, %v686
  %v718 = vlaneseq
  %v719 = vshrl.u32 %v718, 7
  %v720 = vsub.s32 0, %v719
  %v721 = vrot.slane %v717, %v720
  %v722 = vsub.f32 %v567, %v721
  %v723 = vsub.f32 %v568, %v721
  %v724 = vsub.f32 %v569, %v721
  %v725 = vsub.f32 %v570, %v721
  %v726 = vmul.f32 %v722, %v722
  %v727 = vmul.f32 %v723, %v723
  %v728 = vmul.f32 %v724, %v724
  %v729 = vmul.f32 %v725, %v725
  %v730 = vadd.f32 %v726, %v727
  %v731 = vadd.f32 %v730, %v728
  %v732 = vadd.f32 %v731, %v729
  %v733 = vrot.slane %v732, 4
  %v734 = vadd.f32 %v732, %v733
  %v735 = vrot.slane %v734, 2
  %v736 = vadd.f32 %v734, %v735
  %v737 = vrot.slane %v736, 1
  %v738 = vadd.f32 %v736, %v737
  %740 = vrot.lane.b32.xlu0 %v738, 120
  %v741 = vpop.permute.xlu0 %740
  %v743 = vadd.f32 %v738, %v741
  %744 = vrot.lane.b32.xlu0 %v738, 112
  %v745 = vpop.permute.xlu0 %744
  %v747 = vadd.f32 %v743, %v745
  %748 = vrot.lane.b32.xlu0 %v738, 104
  %v749 = vpop.permute.xlu0 %748
  %v751 = vadd.f32 %v747, %v749
  %752 = vrot.lane.b32.xlu0 %v738, 96
  %v753 = vpop.permute.xlu0 %752
  %v755 = vadd.f32 %v751, %v753
  %756 = vrot.lane.b32.xlu0 %v738, 88
  %v757 = vpop.permute.xlu0 %756
  %v759 = vadd.f32 %v755, %v757
  %760 = vrot.lane.b32.xlu0 %v738, 80
  %v761 = vpop.permute.xlu0 %760
  %v763 = vadd.f32 %v759, %v761
  %764 = vrot.lane.b32.xlu0 %v738, 72
  %v765 = vpop.permute.xlu0 %764
  %v767 = vadd.f32 %v763, %v765
  %768 = vrot.lane.b32.xlu0 %v738, 64
  %v769 = vpop.permute.xlu0 %768
  %v771 = vadd.f32 %v767, %v769
  %772 = vrot.lane.b32.xlu0 %v738, 56
  %v773 = vpop.permute.xlu0 %772
  %v775 = vadd.f32 %v771, %v773
  %776 = vrot.lane.b32.xlu0 %v738, 48
  %v777 = vpop.permute.xlu0 %776
  %v779 = vadd.f32 %v775, %v777
  %780 = vrot.lane.b32.xlu0 %v738, 40
  %v781 = vpop.permute.xlu0 %780
  %v783 = vadd.f32 %v779, %v781
  %784 = vrot.lane.b32.xlu0 %v738, 32
  %v785 = vpop.permute.xlu0 %784
  %v787 = vadd.f32 %v783, %v785
  %788 = vrot.lane.b32.xlu0 %v738, 24
  %v789 = vpop.permute.xlu0 %788
  %v791 = vadd.f32 %v787, %v789
  %792 = vrot.lane.b32.xlu0 %v738, 16
  %v793 = vpop.permute.xlu0 %792
  %v795 = vadd.f32 %v791, %v793
  %796 = vrot.lane.b32.xlu0 %v738, 8
  %v797 = vpop.permute.xlu0 %796
  %v799 = vadd.f32 %v795, %v797
  %v800 = vmul.f32 %v799, 0.001953125
  %v801 = vld [vmem:[%s2] sm:$0x1]
  %v802 = vadd.f32 %v800, 1e-05
  %v803 = vrsqrt.pop %v802
  %v804 = vmul.f32 %v801, %v803
  %v806 = vlaneseq
  %v807 = vshrl.u32 %v806, 7
  %v808 = vsub.s32 0, %v807
  %v809 = vrot.slane %v804, %v808
  %810 = vrot.lane.b32.xlu0 %v809, 8
  %v811 = vpop.permute.xlu0 %810
  %813 = vrot.lane.b32.xlu0 %v809, 16
  %v814 = vpop.permute.xlu0 %813
  %816 = vrot.lane.b32.xlu0 %v809, 24
  %v817 = vpop.permute.xlu0 %816
  %819 = vrot.lane.b32.xlu0 %v809, 32
  %v820 = vpop.permute.xlu0 %819
  %822 = vrot.lane.b32.xlu0 %v809, 40
  %v823 = vpop.permute.xlu0 %822
  %825 = vrot.lane.b32.xlu0 %v809, 48
  %v826 = vpop.permute.xlu0 %825
  %828 = vrot.lane.b32.xlu0 %v809, 56
  %v829 = vpop.permute.xlu0 %828
  %831 = vrot.lane.b32.xlu0 %v809, 64
  %v832 = vpop.permute.xlu0 %831
  %834 = vrot.lane.b32.xlu0 %v809, 72
  %v835 = vpop.permute.xlu0 %834
  %837 = vrot.lane.b32.xlu0 %v809, 80
  %v838 = vpop.permute.xlu0 %837
  %840 = vrot.lane.b32.xlu0 %v809, 88
  %v841 = vpop.permute.xlu0 %840
  %843 = vrot.lane.b32.xlu0 %v809, 96
  %v844 = vpop.permute.xlu0 %843
  %846 = vrot.lane.b32.xlu0 %v809, 104
  %v847 = vpop.permute.xlu0 %846
  %849 = vrot.lane.b32.xlu0 %v809, 112
  %v850 = vpop.permute.xlu0 %849
  %852 = vrot.lane.b32.xlu0 %v809, 120
  %v853 = vpop.permute.xlu0 %852
  %v855 = vsel %vm688, %v804, %v811
  %v856 = vsel %vm690, %v855, %v814
  %v857 = vsel %vm692, %v856, %v817
  %v858 = vsel %vm694, %v857, %v820
  %v859 = vsel %vm696, %v858, %v823
  %v860 = vsel %vm698, %v859, %v826
  %v861 = vsel %vm700, %v860, %v829
  %v862 = vsel %vm702, %v861, %v832
  %v863 = vsel %vm704, %v862, %v835
  %v864 = vsel %vm706, %v863, %v838
  %v865 = vsel %vm708, %v864, %v841
  %v866 = vsel %vm710, %v865, %v844
  %v867 = vsel %vm712, %v866, %v847
  %v868 = vsel %vm714, %v867, %v850
  %v869 = vsel %vm716, %v868, %v853
  %v870 = vlaneseq
  %v871 = vshrl.u32 %v870, 7
  %v872 = vsub.s32 0, %v871
  %v873 = vrot.slane %v869, %v872
  %v874 = vmul.f32 %v722, %v873
  %v875 = vmul.f32 %v723, %v873
  %v876 = vmul.f32 %v724, %v873
  %v877 = vmul.f32 %v725, %v873
  %v878 = vld [vmem:[%s3] sm:$0x1]
  %v880 = vlaneseq
  %v881 = vshrl.u32 %v880, 7
  %v882 = vsub.s32 0, %v881
  %v883 = vrot.slane %v878, %v882
  %884 = vrot.lane.b32.xlu0 %v883, 8
  %v885 = vpop.permute.xlu0 %884
  %887 = vrot.lane.b32.xlu0 %v883, 16
  %v888 = vpop.permute.xlu0 %887
  %890 = vrot.lane.b32.xlu0 %v883, 24
  %v891 = vpop.permute.xlu0 %890
  %893 = vrot.lane.b32.xlu0 %v883, 32
  %v894 = vpop.permute.xlu0 %893
  %896 = vrot.lane.b32.xlu0 %v883, 40
  %v897 = vpop.permute.xlu0 %896
  %899 = vrot.lane.b32.xlu0 %v883, 48
  %v900 = vpop.permute.xlu0 %899
  %902 = vrot.lane.b32.xlu0 %v883, 56
  %v903 = vpop.permute.xlu0 %902
  %905 = vrot.lane.b32.xlu0 %v883, 64
  %v906 = vpop.permute.xlu0 %905
  %908 = vrot.lane.b32.xlu0 %v883, 72
  %v909 = vpop.permute.xlu0 %908
  %911 = vrot.lane.b32.xlu0 %v883, 80
  %v912 = vpop.permute.xlu0 %911
  %914 = vrot.lane.b32.xlu0 %v883, 88
  %v915 = vpop.permute.xlu0 %914
  %917 = vrot.lane.b32.xlu0 %v883, 96
  %v918 = vpop.permute.xlu0 %917
  %920 = vrot.lane.b32.xlu0 %v883, 104
  %v921 = vpop.permute.xlu0 %920
  %923 = vrot.lane.b32.xlu0 %v883, 112
  %v924 = vpop.permute.xlu0 %923
  %926 = vrot.lane.b32.xlu0 %v883, 120
  %v927 = vpop.permute.xlu0 %926
  %v929 = vsel %vm688, %v878, %v885
  %v930 = vsel %vm690, %v929, %v888
  %v931 = vsel %vm692, %v930, %v891
  %v932 = vsel %vm694, %v931, %v894
  %v933 = vsel %vm696, %v932, %v897
  %v934 = vsel %vm698, %v933, %v900
  %v935 = vsel %vm700, %v934, %v903
  %v936 = vsel %vm702, %v935, %v906
  %v937 = vsel %vm704, %v936, %v909
  %v938 = vsel %vm706, %v937, %v912
  %v939 = vsel %vm708, %v938, %v915
  %v940 = vsel %vm710, %v939, %v918
  %v941 = vsel %vm712, %v940, %v921
  %v942 = vsel %vm714, %v941, %v924
  %v943 = vsel %vm716, %v942, %v927
  %v944 = vlaneseq
  %v945 = vshrl.u32 %v944, 7
  %v946 = vsub.s32 0, %v945
  %v947 = vrot.slane %v943, %v946
  %v948 = vadd.f32 %v874, %v947
  %v949 = vadd.f32 %v875, %v947
  %v950 = vadd.f32 %v876, %v947
  %v951 = vadd.f32 %v877, %v947
  %v952 = vmax.f32 %v948, 0.0
  %v953 = vmax.f32 %v949, 0.0
  %v954 = vmax.f32 %v950, 0.0
  %v955 = vmax.f32 %v951, 0.0
  %v956 = vpack.c.bf16 %v953, %v952
  %v957 = vpack.c.bf16 %v955, %v954
  %v960 = vunpack.c.l.b16 %v956
  %v961 = vunpack.c.h.b16 %v956
  %v962 = vunpack.c.l.b16 %v957
  %v963 = vunpack.c.h.b16 %v957
  %v964 = vpack.c.b16 %v960, %v960
  %v965 = vpack.c.b16 %v961, %v961
  %v966 = vpack.c.b16 %v962, %v962
  %v967 = vpack.c.b16 %v963, %v963
  %v969 = vshrl.u32 %v964, 16
  %v971 = vrot.slane %v969, 7
  %v972 = vshll.u32 %v964, 16
  %v974 = vor.u32 %v971, %v972
  %v975 = vrot.slane %v971, 4
  %v977 = vshrl.u32 %v965, 16
  %v979 = vrot.slane %v977, 7
  %v980 = vshll.u32 %v965, 16
  %v982 = vor.u32 %v979, %v980
  %v983 = vsel %vm61, %v975, %v982
  %v984 = vrot.slane %v979, 4
  %v986 = vshrl.u32 %v966, 16
  %v988 = vrot.slane %v986, 7
  %v989 = vshll.u32 %v966, 16
  %v991 = vor.u32 %v988, %v989
  %v992 = vrot.slane %v988, 4
  %v994 = vshrl.u32 %v967, 16
  %v996 = vrot.slane %v994, 7
  %v997 = vshll.u32 %v967, 16
  %v999 = vor.u32 %v996, %v997
  %v1000 = vsel %vm61, %v992, %v999
  %v1001 = vrot.slane %v996, 4
  %v1008 = vsel %vm103, %v974, %v118
  %1009 = vst [vmem:[#allocation2] sm:$0xf] %v1008
  %1010 = vst [vmem:[#allocation2 + $0x4] sm:$0xf] %v983
  %v1011 = vld [vmem:[#allocation2 + $0x8] sm:$0x1]
  %v1012 = vsel %vm29, %v984, %v1011
  %1013 = vst [vmem:[#allocation2 + $0x8] sm:$0x1] %v1012
  %v1014 = vld [vmem:[#allocation2 + $0xc] sm:$0xf]
  %v1015 = vsel %vm103, %v991, %v1014
  %1016 = vst [vmem:[#allocation2 + $0xc] sm:$0xf] %v1015
  %1017 = vst [vmem:[#allocation2 + $0x10] sm:$0xf] %v1000
  %v1018 = vld [vmem:[#allocation2 + $0x14] sm:$0x1]
  %v1019 = vsel %vm29, %v1001, %v1018
  %1020 = vst [vmem:[#allocation2 + $0x14] sm:$0x1] %v1019
  %v1021 = vld [vmem:[#allocation2] sm:$0xf]
  %v1022 = vld [vmem:[#allocation2 + $0x4] sm:$0xf]
  %v1023 = vld [vmem:[#allocation2 + $0xc] sm:$0xf]
  %v1024 = vld [vmem:[#allocation2 + $0x10] sm:$0xf]
  %v1025 = vld [vmem:[%s4] sm:$0xf]
  %v1026 = vld [vmem:[%s4 + $0x4] sm:$0xf]
  %v1027 = vld [vmem:[%s4 + $0x8] sm:$0xf]
  %v1028 = vld [vmem:[%s4 + $0xc] sm:$0xf]
  %v1029 = vld [vmem:[%s4 + $0x10] sm:$0xf]
  %v1030 = vld [vmem:[%s4 + $0x14] sm:$0xf]
  %v1031 = vld [vmem:[%s4 + $0x18] sm:$0xf]
  %v1032 = vld [vmem:[%s4 + $0x1c] sm:$0xf]
  %v1033 = vld [vmem:[%s4 + $0x20] sm:$0xf]
  %v1034 = vld [vmem:[%s4 + $0x24] sm:$0xf]
  %v1035 = vld [vmem:[%s4 + $0x28] sm:$0xf]
  %v1036 = vld [vmem:[%s4 + $0x2c] sm:$0xf]
  %v1037 = vld [vmem:[%s4 + $0x30] sm:$0xf]
  %v1038 = vld [vmem:[%s4 + $0x34] sm:$0xf]
  %v1039 = vld [vmem:[%s4 + $0x38] sm:$0xf]
  %v1040 = vld [vmem:[%s4 + $0x3c] sm:$0xf]
  %v1041 = vld [vmem:[#allocation2 + $0x8] sm:$0x1]
  %v1042 = vld [vmem:[#allocation2 + $0x14] sm:$0x1]
  %v1044 = vshrl.u32 %v1021, 16
  %v1046 = vrot.slane %v1044, 4
  %v1047 = vshll.u32 %v1021, 16
  %v1049 = vrot.slane %v1047, 5
  %v1050 = vor.u32 %v1046, %v1049
  %v1051 = vrot.slane %v1050, 4
  %v1053 = vshll.u32 %v1022, 16
  %v1055 = vrot.slane %v1053, 5
  %v1056 = vsel %vm142, %v1051, %v1055
  %v1057 = vshrl.u32 %v1022, 16
  %v1059 = vrot.slane %v1057, 4
  %v1060 = vor.u32 %v1059, %v1055
  %v1061 = vrot.slane %v1060, 4
  %v1063 = vshll.u32 %v1041, 16
  %v1065 = vrot.slane %v1063, 5
  %v1066 = vsel %vm142, %v1061, %v1065
  %v1068 = vshrl.u32 %v1023, 16
  %v1070 = vrot.slane %v1068, 4
  %v1071 = vshll.u32 %v1023, 16
  %v1073 = vrot.slane %v1071, 5
  %v1074 = vor.u32 %v1070, %v1073
  %v1075 = vrot.slane %v1074, 4
  %v1077 = vshll.u32 %v1024, 16
  %v1079 = vrot.slane %v1077, 5
  %v1080 = vsel %vm142, %v1075, %v1079
  %v1081 = vshrl.u32 %v1024, 16
  %v1083 = vrot.slane %v1081, 4
  %v1084 = vor.u32 %v1083, %v1079
  %v1085 = vrot.slane %v1084, 4
  %v1087 = vshll.u32 %v1042, 16
  %v1089 = vrot.slane %v1087, 5
  %v1090 = vsel %vm142, %v1085, %v1089
  %s1091 = scalar_lea.vmem %s4, 64
  %v1092 = vld [vmem:[%s1091] sm:$0xf]
  %v1093 = vld [vmem:[%s1091 + $0x4] sm:$0xf]
  %v1094 = vld [vmem:[%s1091 + $0x8] sm:$0xf]
  %v1095 = vld [vmem:[%s1091 + $0xc] sm:$0xf]
  %v1096 = vld [vmem:[%s1091 + $0x10] sm:$0xf]
  %v1097 = vld [vmem:[%s1091 + $0x14] sm:$0xf]
  %v1098 = vld [vmem:[%s1091 + $0x18] sm:$0xf]
  %v1099 = vld [vmem:[%s1091 + $0x1c] sm:$0xf]
  %v1100 = vld [vmem:[%s1091 + $0x20] sm:$0xf]
  %v1101 = vld [vmem:[%s1091 + $0x24] sm:$0xf]
  %v1102 = vld [vmem:[%s1091 + $0x28] sm:$0xf]
  %v1103 = vld [vmem:[%s1091 + $0x2c] sm:$0xf]
  %v1104 = vld [vmem:[%s1091 + $0x30] sm:$0xf]
  %v1105 = vld [vmem:[%s1091 + $0x34] sm:$0xf]
  %v1106 = vld [vmem:[%s1091 + $0x38] sm:$0xf]
  %v1107 = vld [vmem:[%s1091 + $0x3c] sm:$0xf]
  %v1108 = vunpack.c.l.b16 %v1056
  %v1109 = vunpack.c.l.b16 %v1066
  %v1110 = vunpack.c.l.b16 %v1080
  %v1111 = vunpack.c.l.b16 %v1090
  %v1112 = vpack.c.b16 %v1109, %v1108
  %v1113 = vpack.c.b16 %v1111, %v1110
  %v1132 = vunpack.c.l.b16 %v1092
  %v1133 = vunpack.c.l.b16 %v1093
  %v1134 = vunpack.c.l.b16 %v1094
  %v1135 = vunpack.c.l.b16 %v1095
  %v1136 = vunpack.c.l.b16 %v1096
  %v1137 = vunpack.c.l.b16 %v1097
  %v1138 = vunpack.c.l.b16 %v1098
  %v1139 = vunpack.c.l.b16 %v1099
  %v1140 = vunpack.c.l.b16 %v1100
  %v1141 = vunpack.c.l.b16 %v1101
  %v1142 = vunpack.c.l.b16 %v1102
  %v1143 = vunpack.c.l.b16 %v1103
  %v1144 = vunpack.c.l.b16 %v1104
  %v1145 = vunpack.c.l.b16 %v1105
  %v1146 = vunpack.c.l.b16 %v1106
  %v1147 = vunpack.c.l.b16 %v1107
  %v1148 = vpack.c.b16 %v1133, %v1132
  %v1149 = vpack.c.b16 %v1135, %v1134
  %v1150 = vpack.c.b16 %v1137, %v1136
  %v1151 = vpack.c.b16 %v1139, %v1138
  %v1152 = vpack.c.b16 %v1141, %v1140
  %v1153 = vpack.c.b16 %v1143, %v1142
  %v1154 = vpack.c.b16 %v1145, %v1144
  %v1155 = vpack.c.b16 %v1147, %v1146
  %1164 = vmatprep.subr.bf16.mxu0 0
  %1165 = vmatpush1.bf16.msra.mxu0 %v1155
  %1166 = vmatprep.subr.bf16.mxu0 0
  %1167 = vmatpush1.bf16.msra.mxu0 %v1154
  %1168 = vmatprep.subr.bf16.mxu0 0
  %1169 = vmatpush1.bf16.msra.mxu0 %v1153
  %1170 = vmatprep.subr.bf16.mxu0 0
  %1171 = vmatpush1.bf16.msra.mxu0 %v1152
  %1172 = vmatprep.subr.bf16.mxu0 0
  %1173 = vmatpush1.bf16.msra.mxu0 %v1151
  %1174 = vmatprep.subr.bf16.mxu0 0
  %1175 = vmatpush1.bf16.msra.mxu0 %v1150
  %1176 = vmatprep.subr.bf16.mxu0 0
  %1177 = vmatpush1.bf16.msra.mxu0 %v1149
  %1178 = vmatprep.subr.bf16.mxu0 0
  %1179 = vmatpush1.bf16.msra.mxu0 %v1148
  %1180 = vmatprep.subr.bf16.mxu0 0
  %1181 = vmatpush2.bf16.msra.mxu0 0
  %1182 = vmatprep.subr.bf16.mxu0 0
  %1183 = vmatpush2.bf16.msra.mxu0 0
  %1184 = vmatprep.subr.bf16.mxu0 0
  %1185 = vmatpush2.bf16.msra.mxu0 0
  %1186 = vmatprep.subr.bf16.mxu0 0
  %1187 = vmatpush2.bf16.msra.mxu0 0
  %1188 = vmatprep.subr.bf16.mxu0 0
  %1189 = vmatpush2.bf16.msra.mxu0 0
  %1190 = vmatprep.subr.bf16.mxu0 0
  %1191 = vmatpush2.bf16.msra.mxu0 0
  %1192 = vmatprep.subr.bf16.mxu0 0
  %1193 = vmatpush2.bf16.msra.mxu0 0
  %1194 = vmatprep.subr.bf16.mxu0 0
  %1195 = vmatpush2.bf16.msra.mxu0 0
  %1196 = vmatprep.mubr.bf16.mxu0 0
  %1197 = vmatmul.mubr.bf16.gmra.mxu0 %v1112
  %v1198 = vpop.f32.mrf.mxu0
  %v1199 = vadd.f32 0.0, %v1198
  %v1200 = vpop.f32.mrf.mxu0
  %v1201 = vpop.f32.mrf.mxu0
  %v1202 = vadd.f32 0.0, %v1201
  %v1203 = vpop.f32.mrf.mxu0
  %1204 = vmatprep.mubr.bf16.mxu0 0
  %1205 = vmatmul.mubr.bf16.gmra.mxu0 %v1113
  %v1206 = vpop.f32.mrf.mxu0
  %v1207 = vadd.f32 0.0, %v1206
  %v1208 = vpop.f32.mrf.mxu0
  %v1209 = vpop.f32.mrf.mxu0
  %v1210 = vadd.f32 0.0, %v1209
  %v1211 = vpop.f32.mrf.mxu0
  %1212 = vdwg.mxu0
  %v1217 = vunpack.c.l.b16 %v1021
  %v1218 = vunpack.c.l.b16 %v1022
  %v1219 = vunpack.c.l.b16 %v1023
  %v1220 = vunpack.c.l.b16 %v1024
  %v1221 = vpack.c.b16 %v1218, %v1217
  %v1222 = vpack.c.b16 %v1220, %v1219
  %v1241 = vunpack.c.l.b16 %v1025
  %v1242 = vunpack.c.l.b16 %v1026
  %v1243 = vunpack.c.l.b16 %v1027
  %v1244 = vunpack.c.l.b16 %v1028
  %v1245 = vunpack.c.l.b16 %v1029
  %v1246 = vunpack.c.l.b16 %v1030
  %v1247 = vunpack.c.l.b16 %v1031
  %v1248 = vunpack.c.l.b16 %v1032
  %v1249 = vunpack.c.l.b16 %v1033
  %v1250 = vunpack.c.l.b16 %v1034
  %v1251 = vunpack.c.l.b16 %v1035
  %v1252 = vunpack.c.l.b16 %v1036
  %v1253 = vunpack.c.l.b16 %v1037
  %v1254 = vunpack.c.l.b16 %v1038
  %v1255 = vunpack.c.l.b16 %v1039
  %v1256 = vunpack.c.l.b16 %v1040
  %v1257 = vpack.c.b16 %v1242, %v1241
  %v1258 = vpack.c.b16 %v1244, %v1243
  %v1259 = vpack.c.b16 %v1246, %v1245
  %v1260 = vpack.c.b16 %v1248, %v1247
  %v1261 = vpack.c.b16 %v1250, %v1249
  %v1262 = vpack.c.b16 %v1252, %v1251
  %v1263 = vpack.c.b16 %v1254, %v1253
  %v1264 = vpack.c.b16 %v1256, %v1255
  %1273 = vmatprep.subr.bf16.mxu0 0
  %1274 = vmatpush1.bf16.msra.mxu0 %v1264
  %1275 = vmatprep.subr.bf16.mxu0 0
  %1276 = vmatpush1.bf16.msra.mxu0 %v1263
  %1277 = vmatprep.subr.bf16.mxu0 0
  %1278 = vmatpush1.bf16.msra.mxu0 %v1262
  %1279 = vmatprep.subr.bf16.mxu0 0
  %1280 = vmatpush1.bf16.msra.mxu0 %v1261
  %1281 = vmatprep.subr.bf16.mxu0 0
  %1282 = vmatpush1.bf16.msra.mxu0 %v1260
  %1283 = vmatprep.subr.bf16.mxu0 0
  %1284 = vmatpush1.bf16.msra.mxu0 %v1259
  %1285 = vmatprep.subr.bf16.mxu0 0
  %1286 = vmatpush1.bf16.msra.mxu0 %v1258
  %1287 = vmatprep.subr.bf16.mxu0 0
  %1288 = vmatpush1.bf16.msra.mxu0 %v1257
  %1289 = vmatprep.subr.bf16.mxu0 0
  %1290 = vmatpush2.bf16.msra.mxu0 0
  %1291 = vmatprep.subr.bf16.mxu0 0
  %1292 = vmatpush2.bf16.msra.mxu0 0
  %1293 = vmatprep.subr.bf16.mxu0 0
  %1294 = vmatpush2.bf16.msra.mxu0 0
  %1295 = vmatprep.subr.bf16.mxu0 0
  %1296 = vmatpush2.bf16.msra.mxu0 0
  %1297 = vmatprep.subr.bf16.mxu0 0
  %1298 = vmatpush2.bf16.msra.mxu0 0
  %1299 = vmatprep.subr.bf16.mxu0 0
  %1300 = vmatpush2.bf16.msra.mxu0 0
  %1301 = vmatprep.subr.bf16.mxu0 0
  %1302 = vmatpush2.bf16.msra.mxu0 0
  %1303 = vmatprep.subr.bf16.mxu0 0
  %1304 = vmatpush2.bf16.msra.mxu0 0
  %1305 = vmatprep.mubr.bf16.mxu0 0
  %1306 = vmatmul.mubr.bf16.gmra.mxu0 %v1221
  %v1307 = vpop.f32.mrf.mxu0
  %v1308 = vadd.f32 %v1199, %v1307
  %v1309 = vpop.f32.mrf.mxu0
  %v1310 = vpop.f32.mrf.mxu0
  %v1311 = vadd.f32 %v1202, %v1310
  %v1312 = vpop.f32.mrf.mxu0
  %1313 = vmatprep.mubr.bf16.mxu0 0
  %1314 = vmatmul.mubr.bf16.gmra.mxu0 %v1222
  %v1315 = vpop.f32.mrf.mxu0
  %v1316 = vadd.f32 %v1207, %v1315
  %v1317 = vpop.f32.mrf.mxu0
  %v1318 = vpop.f32.mrf.mxu0
  %v1319 = vadd.f32 %v1210, %v1318
  %v1320 = vpop.f32.mrf.mxu0
  %1321 = vdwg.mxu0
  %v1322 = vld [vmem:[#allocation2] sm:$0xe]
  %v1323 = vld [vmem:[#allocation2 + $0xc] sm:$0xe]
  %v1328 = vrot.slane %v1322, 5
  %v1329 = vrot.slane %v1328, 4
  %v1330 = vrot.slane %v1022, 5
  %v1331 = vsel %vm430, %v1329, %v1330
  %v1332 = vrot.slane %v1330, 4
  %v1333 = vrot.slane %v1041, 5
  %v1334 = vsel %vm430, %v1332, %v1333
  %v1335 = vrot.slane %v1323, 5
  %v1336 = vrot.slane %v1335, 4
  %v1337 = vrot.slane %v1024, 5
  %v1338 = vsel %vm430, %v1336, %v1337
  %v1339 = vrot.slane %v1337, 4
  %v1340 = vrot.slane %v1042, 5
  %v1341 = vsel %vm430, %v1339, %v1340
  %s1342 = scalar_lea.vmem %s4, 128
  %v1343 = vld [vmem:[%s1342] sm:$0xf]
  %v1344 = vld [vmem:[%s1342 + $0x4] sm:$0xf]
  %v1345 = vld [vmem:[%s1342 + $0x8] sm:$0xf]
  %v1346 = vld [vmem:[%s1342 + $0xc] sm:$0xf]
  %v1347 = vld [vmem:[%s1342 + $0x10] sm:$0xf]
  %v1348 = vld [vmem:[%s1342 + $0x14] sm:$0xf]
  %v1349 = vld [vmem:[%s1342 + $0x18] sm:$0xf]
  %v1350 = vld [vmem:[%s1342 + $0x1c] sm:$0xf]
  %v1351 = vld [vmem:[%s1342 + $0x20] sm:$0xf]
  %v1352 = vld [vmem:[%s1342 + $0x24] sm:$0xf]
  %v1353 = vld [vmem:[%s1342 + $0x28] sm:$0xf]
  %v1354 = vld [vmem:[%s1342 + $0x2c] sm:$0xf]
  %v1355 = vld [vmem:[%s1342 + $0x30] sm:$0xf]
  %v1356 = vld [vmem:[%s1342 + $0x34] sm:$0xf]
  %v1357 = vld [vmem:[%s1342 + $0x38] sm:$0xf]
  %v1358 = vld [vmem:[%s1342 + $0x3c] sm:$0xf]
  %v1359 = vunpack.c.l.b16 %v1331
  %v1360 = vunpack.c.l.b16 %v1334
  %v1361 = vunpack.c.l.b16 %v1338
  %v1362 = vunpack.c.l.b16 %v1341
  %v1363 = vpack.c.b16 %v1360, %v1359
  %v1364 = vpack.c.b16 %v1362, %v1361
  %v1383 = vunpack.c.l.b16 %v1343
  %v1384 = vunpack.c.l.b16 %v1344
  %v1385 = vunpack.c.l.b16 %v1345
  %v1386 = vunpack.c.l.b16 %v1346
  %v1387 = vunpack.c.l.b16 %v1347
  %v1388 = vunpack.c.l.b16 %v1348
  %v1389 = vunpack.c.l.b16 %v1349
  %v1390 = vunpack.c.l.b16 %v1350
  %v1391 = vunpack.c.l.b16 %v1351
  %v1392 = vunpack.c.l.b16 %v1352
  %v1393 = vunpack.c.l.b16 %v1353
  %v1394 = vunpack.c.l.b16 %v1354
  %v1395 = vunpack.c.l.b16 %v1355
  %v1396 = vunpack.c.l.b16 %v1356
  %v1397 = vunpack.c.l.b16 %v1357
  %v1398 = vunpack.c.l.b16 %v1358
  %v1399 = vpack.c.b16 %v1384, %v1383
  %v1400 = vpack.c.b16 %v1386, %v1385
  %v1401 = vpack.c.b16 %v1388, %v1387
  %v1402 = vpack.c.b16 %v1390, %v1389
  %v1403 = vpack.c.b16 %v1392, %v1391
  %v1404 = vpack.c.b16 %v1394, %v1393
  %v1405 = vpack.c.b16 %v1396, %v1395
  %v1406 = vpack.c.b16 %v1398, %v1397
  %1415 = vmatprep.subr.bf16.mxu0 0
  %1416 = vmatpush1.bf16.msra.mxu0 %v1406
  %1417 = vmatprep.subr.bf16.mxu0 0
  %1418 = vmatpush1.bf16.msra.mxu0 %v1405
  %1419 = vmatprep.subr.bf16.mxu0 0
  %1420 = vmatpush1.bf16.msra.mxu0 %v1404
  %1421 = vmatprep.subr.bf16.mxu0 0
  %1422 = vmatpush1.bf16.msra.mxu0 %v1403
  %1423 = vmatprep.subr.bf16.mxu0 0
  %1424 = vmatpush1.bf16.msra.mxu0 %v1402
  %1425 = vmatprep.subr.bf16.mxu0 0
  %1426 = vmatpush1.bf16.msra.mxu0 %v1401
  %1427 = vmatprep.subr.bf16.mxu0 0
  %1428 = vmatpush1.bf16.msra.mxu0 %v1400
  %1429 = vmatprep.subr.bf16.mxu0 0
  %1430 = vmatpush1.bf16.msra.mxu0 %v1399
  %1431 = vmatprep.subr.bf16.mxu0 0
  %1432 = vmatpush2.bf16.msra.mxu0 0
  %1433 = vmatprep.subr.bf16.mxu0 0
  %1434 = vmatpush2.bf16.msra.mxu0 0
  %1435 = vmatprep.subr.bf16.mxu0 0
  %1436 = vmatpush2.bf16.msra.mxu0 0
  %1437 = vmatprep.subr.bf16.mxu0 0
  %1438 = vmatpush2.bf16.msra.mxu0 0
  %1439 = vmatprep.subr.bf16.mxu0 0
  %1440 = vmatpush2.bf16.msra.mxu0 0
  %1441 = vmatprep.subr.bf16.mxu0 0
  %1442 = vmatpush2.bf16.msra.mxu0 0
  %1443 = vmatprep.subr.bf16.mxu0 0
  %1444 = vmatpush2.bf16.msra.mxu0 0
  %1445 = vmatprep.subr.bf16.mxu0 0
  %1446 = vmatpush2.bf16.msra.mxu0 0
  %1447 = vmatprep.mubr.bf16.mxu0 0
  %1448 = vmatmul.mubr.bf16.gmra.mxu0 %v1363
  %v1449 = vpop.f32.mrf.mxu0
  %v1450 = vadd.f32 0.0, %v1449
  %v1451 = vpop.f32.mrf.mxu0
  %v1452 = vpop.f32.mrf.mxu0
  %v1453 = vadd.f32 0.0, %v1452
  %v1454 = vpop.f32.mrf.mxu0
  %1455 = vmatprep.mubr.bf16.mxu0 0
  %1456 = vmatmul.mubr.bf16.gmra.mxu0 %v1364
  %v1457 = vpop.f32.mrf.mxu0
  %v1458 = vadd.f32 0.0, %v1457
  %v1459 = vpop.f32.mrf.mxu0
  %v1460 = vpop.f32.mrf.mxu0
  %v1461 = vadd.f32 0.0, %v1460
  %v1462 = vpop.f32.mrf.mxu0
  %1463 = vdwg.mxu0
  %v1464 = vadd.f32 %v1308, %v1450
  %v1465 = vadd.f32 %v1311, %v1453
  %v1466 = vadd.f32 %v1316, %v1458
  %v1467 = vadd.f32 %v1319, %v1461
  %v1468 = vadd.f32 %v1464, %v1465
  %v1469 = vadd.f32 %v1468, %v1466
  %v1470 = vadd.f32 %v1469, %v1467
  %v1471 = vrot.slane %v1470, 4
  %v1472 = vadd.f32 %v1470, %v1471
  %v1473 = vrot.slane %v1472, 2
  %v1474 = vadd.f32 %v1472, %v1473
  %v1475 = vrot.slane %v1474, 1
  %v1476 = vadd.f32 %v1474, %v1475
  %1478 = vrot.lane.b32.xlu0 %v1476, 120
  %v1479 = vpop.permute.xlu0 %1478
  %v1481 = vadd.f32 %v1476, %v1479
  %1482 = vrot.lane.b32.xlu0 %v1476, 112
  %v1483 = vpop.permute.xlu0 %1482
  %v1485 = vadd.f32 %v1481, %v1483
  %1486 = vrot.lane.b32.xlu0 %v1476, 104
  %v1487 = vpop.permute.xlu0 %1486
  %v1489 = vadd.f32 %v1485, %v1487
  %1490 = vrot.lane.b32.xlu0 %v1476, 96
  %v1491 = vpop.permute.xlu0 %1490
  %v1493 = vadd.f32 %v1489, %v1491
  %1494 = vrot.lane.b32.xlu0 %v1476, 88
  %v1495 = vpop.permute.xlu0 %1494
  %v1497 = vadd.f32 %v1493, %v1495
  %1498 = vrot.lane.b32.xlu0 %v1476, 80
  %v1499 = vpop.permute.xlu0 %1498
  %v1501 = vadd.f32 %v1497, %v1499
  %1502 = vrot.lane.b32.xlu0 %v1476, 72
  %v1503 = vpop.permute.xlu0 %1502
  %v1505 = vadd.f32 %v1501, %v1503
  %1506 = vrot.lane.b32.xlu0 %v1476, 64
  %v1507 = vpop.permute.xlu0 %1506
  %v1509 = vadd.f32 %v1505, %v1507
  %1510 = vrot.lane.b32.xlu0 %v1476, 56
  %v1511 = vpop.permute.xlu0 %1510
  %v1513 = vadd.f32 %v1509, %v1511
  %1514 = vrot.lane.b32.xlu0 %v1476, 48
  %v1515 = vpop.permute.xlu0 %1514
  %v1517 = vadd.f32 %v1513, %v1515
  %1518 = vrot.lane.b32.xlu0 %v1476, 40
  %v1519 = vpop.permute.xlu0 %1518
  %v1521 = vadd.f32 %v1517, %v1519
  %1522 = vrot.lane.b32.xlu0 %v1476, 32
  %v1523 = vpop.permute.xlu0 %1522
  %v1525 = vadd.f32 %v1521, %v1523
  %1526 = vrot.lane.b32.xlu0 %v1476, 24
  %v1527 = vpop.permute.xlu0 %1526
  %v1529 = vadd.f32 %v1525, %v1527
  %1530 = vrot.lane.b32.xlu0 %v1476, 16
  %v1531 = vpop.permute.xlu0 %1530
  %v1533 = vadd.f32 %v1529, %v1531
  %1534 = vrot.lane.b32.xlu0 %v1476, 8
  %v1535 = vpop.permute.xlu0 %1534
  %v1537 = vadd.f32 %v1533, %v1535
  %v1538 = vmul.f32 %v1537, 0.001953125
  %1540 = vrot.lane.b32.xlu0 %v1538, 8
  %v1541 = vpop.permute.xlu0 %1540
  %1543 = vrot.lane.b32.xlu0 %v1538, 16
  %v1544 = vpop.permute.xlu0 %1543
  %1546 = vrot.lane.b32.xlu0 %v1538, 24
  %v1547 = vpop.permute.xlu0 %1546
  %1549 = vrot.lane.b32.xlu0 %v1538, 32
  %v1550 = vpop.permute.xlu0 %1549
  %1552 = vrot.lane.b32.xlu0 %v1538, 40
  %v1553 = vpop.permute.xlu0 %1552
  %1555 = vrot.lane.b32.xlu0 %v1538, 48
  %v1556 = vpop.permute.xlu0 %1555
  %1558 = vrot.lane.b32.xlu0 %v1538, 56
  %v1559 = vpop.permute.xlu0 %1558
  %1561 = vrot.lane.b32.xlu0 %v1538, 64
  %v1562 = vpop.permute.xlu0 %1561
  %1564 = vrot.lane.b32.xlu0 %v1538, 72
  %v1565 = vpop.permute.xlu0 %1564
  %1567 = vrot.lane.b32.xlu0 %v1538, 80
  %v1568 = vpop.permute.xlu0 %1567
  %1570 = vrot.lane.b32.xlu0 %v1538, 88
  %v1571 = vpop.permute.xlu0 %1570
  %1573 = vrot.lane.b32.xlu0 %v1538, 96
  %v1574 = vpop.permute.xlu0 %1573
  %1576 = vrot.lane.b32.xlu0 %v1538, 104
  %v1577 = vpop.permute.xlu0 %1576
  %1579 = vrot.lane.b32.xlu0 %v1538, 112
  %v1580 = vpop.permute.xlu0 %1579
  %1582 = vrot.lane.b32.xlu0 %v1538, 120
  %v1583 = vpop.permute.xlu0 %1582
  %v1585 = vsel %vm688, %v1538, %v1541
  %v1586 = vsel %vm690, %v1585, %v1544
  %v1587 = vsel %vm692, %v1586, %v1547
  %v1588 = vsel %vm694, %v1587, %v1550
  %v1589 = vsel %vm696, %v1588, %v1553
  %v1590 = vsel %vm698, %v1589, %v1556
  %v1591 = vsel %vm700, %v1590, %v1559
  %v1592 = vsel %vm702, %v1591, %v1562
  %v1593 = vsel %vm704, %v1592, %v1565
  %v1594 = vsel %vm706, %v1593, %v1568
  %v1595 = vsel %vm708, %v1594, %v1571
  %v1596 = vsel %vm710, %v1595, %v1574
  %v1597 = vsel %vm712, %v1596, %v1577
  %v1598 = vsel %vm714, %v1597, %v1580
  %v1599 = vsel %vm716, %v1598, %v1583
  %v1600 = vlaneseq
  %v1601 = vshrl.u32 %v1600, 7
  %v1602 = vsub.s32 0, %v1601
  %v1603 = vrot.slane %v1599, %v1602
  %v1604 = vsub.f32 %v1464, %v1603
  %v1605 = vsub.f32 %v1465, %v1603
  %v1606 = vsub.f32 %v1466, %v1603
  %v1607 = vsub.f32 %v1467, %v1603
  %v1608 = vmul.f32 %v1604, %v1604
  %v1609 = vmul.f32 %v1605, %v1605
  %v1610 = vmul.f32 %v1606, %v1606
  %v1611 = vmul.f32 %v1607, %v1607
  %v1612 = vadd.f32 %v1608, %v1609
  %v1613 = vadd.f32 %v1612, %v1610
  %v1614 = vadd.f32 %v1613, %v1611
  %v1615 = vrot.slane %v1614, 4
  %v1616 = vadd.f32 %v1614, %v1615
  %v1617 = vrot.slane %v1616, 2
  %v1618 = vadd.f32 %v1616, %v1617
  %v1619 = vrot.slane %v1618, 1
  %v1620 = vadd.f32 %v1618, %v1619
  %1622 = vrot.lane.b32.xlu0 %v1620, 120
  %v1623 = vpop.permute.xlu0 %1622
  %v1625 = vadd.f32 %v1620, %v1623
  %1626 = vrot.lane.b32.xlu0 %v1620, 112
  %v1627 = vpop.permute.xlu0 %1626
  %v1629 = vadd.f32 %v1625, %v1627
  %1630 = vrot.lane.b32.xlu0 %v1620, 104
  %v1631 = vpop.permute.xlu0 %1630
  %v1633 = vadd.f32 %v1629, %v1631
  %1634 = vrot.lane.b32.xlu0 %v1620, 96
  %v1635 = vpop.permute.xlu0 %1634
  %v1637 = vadd.f32 %v1633, %v1635
  %1638 = vrot.lane.b32.xlu0 %v1620, 88
  %v1639 = vpop.permute.xlu0 %1638
  %v1641 = vadd.f32 %v1637, %v1639
  %1642 = vrot.lane.b32.xlu0 %v1620, 80
  %v1643 = vpop.permute.xlu0 %1642
  %v1645 = vadd.f32 %v1641, %v1643
  %1646 = vrot.lane.b32.xlu0 %v1620, 72
  %v1647 = vpop.permute.xlu0 %1646
  %v1649 = vadd.f32 %v1645, %v1647
  %1650 = vrot.lane.b32.xlu0 %v1620, 64
  %v1651 = vpop.permute.xlu0 %1650
  %v1653 = vadd.f32 %v1649, %v1651
  %1654 = vrot.lane.b32.xlu0 %v1620, 56
  %v1655 = vpop.permute.xlu0 %1654
  %v1657 = vadd.f32 %v1653, %v1655
  %1658 = vrot.lane.b32.xlu0 %v1620, 48
  %v1659 = vpop.permute.xlu0 %1658
  %v1661 = vadd.f32 %v1657, %v1659
  %1662 = vrot.lane.b32.xlu0 %v1620, 40
  %v1663 = vpop.permute.xlu0 %1662
  %v1665 = vadd.f32 %v1661, %v1663
  %1666 = vrot.lane.b32.xlu0 %v1620, 32
  %v1667 = vpop.permute.xlu0 %1666
  %v1669 = vadd.f32 %v1665, %v1667
  %1670 = vrot.lane.b32.xlu0 %v1620, 24
  %v1671 = vpop.permute.xlu0 %1670
  %v1673 = vadd.f32 %v1669, %v1671
  %1674 = vrot.lane.b32.xlu0 %v1620, 16
  %v1675 = vpop.permute.xlu0 %1674
  %v1677 = vadd.f32 %v1673, %v1675
  %1678 = vrot.lane.b32.xlu0 %v1620, 8
  %v1679 = vpop.permute.xlu0 %1678
  %v1681 = vadd.f32 %v1677, %v1679
  %v1682 = vmul.f32 %v1681, 0.001953125
  %v1683 = vld [vmem:[%s5] sm:$0x1]
  %v1684 = vadd.f32 %v1682, 1e-05
  %v1685 = vrsqrt.pop %v1684
  %v1686 = vmul.f32 %v1683, %v1685
  %v1688 = vlaneseq
  %v1689 = vshrl.u32 %v1688, 7
  %v1690 = vsub.s32 0, %v1689
  %v1691 = vrot.slane %v1686, %v1690
  %1692 = vrot.lane.b32.xlu0 %v1691, 8
  %v1693 = vpop.permute.xlu0 %1692
  %1695 = vrot.lane.b32.xlu0 %v1691, 16
  %v1696 = vpop.permute.xlu0 %1695
  %1698 = vrot.lane.b32.xlu0 %v1691, 24
  %v1699 = vpop.permute.xlu0 %1698
  %1701 = vrot.lane.b32.xlu0 %v1691, 32
  %v1702 = vpop.permute.xlu0 %1701
  %1704 = vrot.lane.b32.xlu0 %v1691, 40
  %v1705 = vpop.permute.xlu0 %1704
  %1707 = vrot.lane.b32.xlu0 %v1691, 48
  %v1708 = vpop.permute.xlu0 %1707
  %1710 = vrot.lane.b32.xlu0 %v1691, 56
  %v1711 = vpop.permute.xlu0 %1710
  %1713 = vrot.lane.b32.xlu0 %v1691, 64
  %v1714 = vpop.permute.xlu0 %1713
  %1716 = vrot.lane.b32.xlu0 %v1691, 72
  %v1717 = vpop.permute.xlu0 %1716
  %1719 = vrot.lane.b32.xlu0 %v1691, 80
  %v1720 = vpop.permute.xlu0 %1719
  %1722 = vrot.lane.b32.xlu0 %v1691, 88
  %v1723 = vpop.permute.xlu0 %1722
  %1725 = vrot.lane.b32.xlu0 %v1691, 96
  %v1726 = vpop.permute.xlu0 %1725
  %1728 = vrot.lane.b32.xlu0 %v1691, 104
  %v1729 = vpop.permute.xlu0 %1728
  %1731 = vrot.lane.b32.xlu0 %v1691, 112
  %v1732 = vpop.permute.xlu0 %1731
  %1734 = vrot.lane.b32.xlu0 %v1691, 120
  %v1735 = vpop.permute.xlu0 %1734
  %v1737 = vsel %vm688, %v1686, %v1693
  %v1738 = vsel %vm690, %v1737, %v1696
  %v1739 = vsel %vm692, %v1738, %v1699
  %v1740 = vsel %vm694, %v1739, %v1702
  %v1741 = vsel %vm696, %v1740, %v1705
  %v1742 = vsel %vm698, %v1741, %v1708
  %v1743 = vsel %vm700, %v1742, %v1711
  %v1744 = vsel %vm702, %v1743, %v1714
  %v1745 = vsel %vm704, %v1744, %v1717
  %v1746 = vsel %vm706, %v1745, %v1720
  %v1747 = vsel %vm708, %v1746, %v1723
  %v1748 = vsel %vm710, %v1747, %v1726
  %v1749 = vsel %vm712, %v1748, %v1729
  %v1750 = vsel %vm714, %v1749, %v1732
  %v1751 = vsel %vm716, %v1750, %v1735
  %v1752 = vlaneseq
  %v1753 = vshrl.u32 %v1752, 7
  %v1754 = vsub.s32 0, %v1753
  %v1755 = vrot.slane %v1751, %v1754
  %v1756 = vmul.f32 %v1604, %v1755
  %v1757 = vmul.f32 %v1605, %v1755
  %v1758 = vmul.f32 %v1606, %v1755
  %v1759 = vmul.f32 %v1607, %v1755
  %v1760 = vld [vmem:[%s6] sm:$0x1]
  %v1762 = vlaneseq
  %v1763 = vshrl.u32 %v1762, 7
  %v1764 = vsub.s32 0, %v1763
  %v1765 = vrot.slane %v1760, %v1764
  %1766 = vrot.lane.b32.xlu0 %v1765, 8
  %v1767 = vpop.permute.xlu0 %1766
  %1769 = vrot.lane.b32.xlu0 %v1765, 16
  %v1770 = vpop.permute.xlu0 %1769
  %1772 = vrot.lane.b32.xlu0 %v1765, 24
  %v1773 = vpop.permute.xlu0 %1772
  %1775 = vrot.lane.b32.xlu0 %v1765, 32
  %v1776 = vpop.permute.xlu0 %1775
  %1778 = vrot.lane.b32.xlu0 %v1765, 40
  %v1779 = vpop.permute.xlu0 %1778
  %1781 = vrot.lane.b32.xlu0 %v1765, 48
  %v1782 = vpop.permute.xlu0 %1781
  %1784 = vrot.lane.b32.xlu0 %v1765, 56
  %v1785 = vpop.permute.xlu0 %1784
  %1787 = vrot.lane.b32.xlu0 %v1765, 64
  %v1788 = vpop.permute.xlu0 %1787
  %1790 = vrot.lane.b32.xlu0 %v1765, 72
  %v1791 = vpop.permute.xlu0 %1790
  %1793 = vrot.lane.b32.xlu0 %v1765, 80
  %v1794 = vpop.permute.xlu0 %1793
  %1796 = vrot.lane.b32.xlu0 %v1765, 88
  %v1797 = vpop.permute.xlu0 %1796
  %1799 = vrot.lane.b32.xlu0 %v1765, 96
  %v1800 = vpop.permute.xlu0 %1799
  %1802 = vrot.lane.b32.xlu0 %v1765, 104
  %v1803 = vpop.permute.xlu0 %1802
  %1805 = vrot.lane.b32.xlu0 %v1765, 112
  %v1806 = vpop.permute.xlu0 %1805
  %1808 = vrot.lane.b32.xlu0 %v1765, 120
  %v1809 = vpop.permute.xlu0 %1808
  %v1811 = vsel %vm688, %v1760, %v1767
  %v1812 = vsel %vm690, %v1811, %v1770
  %v1813 = vsel %vm692, %v1812, %v1773
  %v1814 = vsel %vm694, %v1813, %v1776
  %v1815 = vsel %vm696, %v1814, %v1779
  %v1816 = vsel %vm698, %v1815, %v1782
  %v1817 = vsel %vm700, %v1816, %v1785
  %v1818 = vsel %vm702, %v1817, %v1788
  %v1819 = vsel %vm704, %v1818, %v1791
  %v1820 = vsel %vm706, %v1819, %v1794
  %v1821 = vsel %vm708, %v1820, %v1797
  %v1822 = vsel %vm710, %v1821, %v1800
  %v1823 = vsel %vm712, %v1822, %v1803
  %v1824 = vsel %vm714, %v1823, %v1806
  %v1825 = vsel %vm716, %v1824, %v1809
  %v1826 = vlaneseq
  %v1827 = vshrl.u32 %v1826, 7
  %v1828 = vsub.s32 0, %v1827
  %v1829 = vrot.slane %v1825, %v1828
  %v1830 = vadd.f32 %v1756, %v1829
  %v1831 = vadd.f32 %v1757, %v1829
  %v1832 = vadd.f32 %v1758, %v1829
  %v1833 = vadd.f32 %v1759, %v1829
  %v1834 = vadd.f32 %v1830, %v44
  %v1835 = vadd.f32 %v1831, %v45
  %v1836 = vadd.f32 %v1832, %v46
  %v1837 = vadd.f32 %v1833, %v47
  %v1838 = vmax.f32 %v1834, 0.0
  %v1839 = vmax.f32 %v1835, 0.0
  %v1840 = vmax.f32 %v1836, 0.0
  %v1841 = vmax.f32 %v1837, 0.0
  %1842 = vst [vmem:[%s7] sm:$0xff] %v1838
  %1843 = vst [vmem:[%s7 + $0x8] sm:$0xff] %v1839
  %1844 = vst [vmem:[%s7 + $0x10] sm:$0xff] %v1840
  %1845 = vst [vmem:[%s7 + $0x18] sm:$0xff] %v1841
  // Predicated region
  $region30: #{basic_block_forward.1} parent=0 // pred_check
    _
  $region31: #{basic_block_forward.1} parent=0 // pred_check_branch
    %1847 = sbr.rel (0) target = $region33
  $region32: #{basic_block_forward.1} parent=0 // pred_region
    _
  $region33: #{basic_block_forward.1} parent=0 // pred_fallthru
    _
  // Predicated region
  $region34: #{basic_block_forward.1} parent=0 // pred_check
    _
  $region35: #{basic_block_forward.1} parent=0 // pred_check_branch
    %1849 = sbr.rel (0) target = $region37
  $region36: #{basic_block_forward.1} parent=0 // pred_region
    _
  $region37: #{basic_block_forward.1} parent=0 // pred_fallthru
    _

</llo_original>
